<compile_context>
chip_gen: v7x
topology: tpu7x:2x2x1
jax: 0.10.0
libtpu: 0.0.40
codegen_flags: <defaults>
</compile_context>

<pallas_src>
import functools

import jax
import jax.numpy as jnp
from jax.experimental import pallas as pl
from jax.experimental.pallas import tpu as pltpu

EPS = 1e-5          # BatchNorm1d default eps
NEG_SLOPE = 0.01    # LeakyReLU default negative_slope
CONV_COUT = (16, 32, 64, 64, 32)


def _leaky(x):
    return jnp.where(x > 0, x, NEG_SLOPE * x)


def _bn_train(y):
    # BatchNorm1d (training mode): batch stats over all (b, l) rows per channel.
    # Single-pass: var = E[y^2] - E[y]^2 (biased, like PyTorch normalization).
    mean = jnp.mean(y, axis=0, keepdims=True)
    msq = jnp.mean(y * y, axis=0, keepdims=True)
    var = jnp.maximum(msq - mean * mean, 0.0)
    return (y - mean) * jax.lax.rsqrt(var + EPS)


def generator_kernel(x_ref, wr_ref, w1_ref, w2_ref, w3_ref, w4_ref, w5_ref,
                     w1g_ref, wl2_ref, wl3_ref, cb_ref, lb_ref,
                     o_ref, hs_ref, *, B, L, D, d1, d2, d3, apply_softmax):
    # ---- reduction_layer: Conv2d(1->4, (1, D)) + ReLU  == per-(b,l) matmul ----
    h = jnp.dot(x_ref[...], wr_ref[...], preferred_element_type=jnp.float32)
    h = jnp.maximum(h + cb_ref[0:1, 0:4], 0.0)

    # ---- convultion_layer: 5 x (Conv1d(k=1) + BatchNorm1d + LeakyReLU) ----
    for i, (w_ref, cout) in enumerate(
            zip((w1_ref, w2_ref, w3_ref, w4_ref, w5_ref), CONV_COUT)):
        y = jnp.dot(h.astype(jnp.bfloat16), w_ref[...],
                    preferred_element_type=jnp.float32)
        y = y + cb_ref[i + 1:i + 2, 0:cout]
        h = _leaky(_bn_train(y))

    # Stash the (L*B, 32) conv output so contiguous per-position row blocks
    # can be sliced from a ref (rows are ordered position-major: r = l*B + b).
    hs_ref[...] = h

    # ---- linear_layer ----
    # Linear 1 over the channel-major flatten z[b, c*L + l] = conv[b, c, l]:
    # out1 = sum_l  h[l*B:(l+1)*B, :] @ w1g[l]   with w1g[l, c, :] = Wl1[c*L+l, :]
    # (weight pre-permuted at init -> no activation transpose/reshape needed).
    acc = jnp.zeros((B, d1), jnp.float32)
    for l in range(L):
        blk = hs_ref[l * B:(l + 1) * B, :].astype(jnp.bfloat16)      # (B, 32)
        acc = acc + jnp.dot(blk, w1g_ref[l],
                            preferred_element_type=jnp.float32)
    z = _leaky(acc + lb_ref[0:1, 0:d1])

    z = _leaky(jnp.dot(z.astype(jnp.bfloat16), wl2_ref[...],
                       preferred_element_type=jnp.float32) + lb_ref[1:2, 0:d2])
    z = jnp.dot(z.astype(jnp.bfloat16), wl3_ref[...],
                preferred_element_type=jnp.float32) + lb_ref[2:3, 0:d3]
    out = jnp.maximum(z, 0.0)                                        # (B, L*D)

    # ---- final_layer: Softmax over the dict axis (groups of D lanes) ----
    if apply_softmax:
        for l in range(L):
            seg = out[:, l * D:(l + 1) * D]
            seg = seg - jnp.max(seg, axis=-1, keepdims=True)
            e = jnp.exp(seg)
            inv = pl.reciprocal(jnp.sum(e, axis=-1, keepdims=True), approx=False)
            o_ref[:, l * D:(l + 1) * D] = e * inv
    else:
        o_ref[...] = out


def init_params(key, length, dict_size):
    """Deterministic synthetic parameters matching GeneratorV2.__init__ shapes."""
    L, D = length, dict_size
    d1, d2, d3 = L * D // 4, L * D // 2, L * D
    ks = jax.random.split(key, 12)

    def w(k, shape):
        return jax.random.normal(k, shape, jnp.float32) * 0.1

    p = {"length": L, "dict_size": D}

    # reduction_layer Conv2d(1->4, (1, D)): weight (4,1,1,D) stored as (D,4) bf16
    p["wr"] = w(ks[0], (D, 4)).astype(jnp.bfloat16)

    # All conv-stack biases (and reduction bias) packed into one (6, 128) array.
    conv_bias = jnp.zeros((6, 128), jnp.float32)
    conv_bias = conv_bias.at[0, :4].set(w(ks[1], (4,)))

    # convultion_layer Conv1d(k=1) weights (Cout,Cin,1) stored as (Cin,Cout) bf16
    chans = [(4, 16), (16, 32), (32, 64), (64, 64), (64, 32)]
    for n, (cin, cout) in enumerate(chans, start=1):
        p[f"w{n}"] = w(ks[2 * n], (cin, cout)).astype(jnp.bfloat16)
        conv_bias = conv_bias.at[n, :cout].set(w(ks[2 * n + 1], (cout,)))
    p["conv_bias"] = conv_bias

    # linear_layer: Linear weights (out,in) stored transposed (in,out).
    # Linear-1 input index is the channel-major flatten c*L + l; pre-gather it
    # into (L, 32, d1) so the kernel needs no activation transpose:
    #   w1g[l, c, :] = Wl1[c*L + l, :]
    wl1 = w(jax.random.fold_in(key, 100), (32 * L, d1))
    p["w1g"] = wl1.reshape(32, L, d1).transpose(1, 0, 2).astype(jnp.bfloat16)
    p["wl2"] = w(jax.random.fold_in(key, 101), (d1, d2)).astype(jnp.bfloat16)
    p["wl3"] = w(jax.random.fold_in(key, 102), (d2, d3)).astype(jnp.bfloat16)

    # Linear biases packed into one (3, L*D) array.
    lin_bias = jnp.zeros((3, d3), jnp.float32)
    lin_bias = lin_bias.at[0, :d1].set(w(jax.random.fold_in(key, 103), (d1,)))
    lin_bias = lin_bias.at[1, :d2].set(w(jax.random.fold_in(key, 104), (d2,)))
    lin_bias = lin_bias.at[2, :d3].set(w(jax.random.fold_in(key, 105), (d3,)))
    p["lin_bias"] = lin_bias
    return p


def generator_v2_forward(params, X, logits=True):
    """X: (B, 1, length, dict_size) float32 -> (B, 1, length, dict_size)."""
    L, D = params["length"], params["dict_size"]
    B = X.shape[0]
    d1, d2, d3 = L * D // 4, L * D // 2, L * D

    # Rows ordered position-major (l, b): pairs with the pre-permuted Linear-1
    # weight so the conv->MLP channel-major flatten is fully fused in-kernel
    # (tiny one-time input permutation, no mid-pipeline HBM transpose).
    x = (X.reshape(B, L, D).transpose(1, 0, 2).reshape(L * B, D)
         .astype(jnp.bfloat16))

    args = (
        x, params["wr"],
        params["w1"], params["w2"], params["w3"], params["w4"], params["w5"],
        params["w1g"], params["wl2"], params["wl3"],
        params["conv_bias"], params["lin_bias"],
    )
    in_specs = [pl.BlockSpec(a.shape, lambda i, nd=a.ndim: (0,) * nd)
                for a in args]

    kernel = functools.partial(
        generator_kernel, B=B, L=L, D=D, d1=d1, d2=d2, d3=d3,
        apply_softmax=not logits)

    out = pl.pallas_call(
        kernel,
        out_shape=jax.ShapeDtypeStruct((B, L * D), jnp.float32),
        grid=(1,),
        in_specs=in_specs,
        out_specs=pl.BlockSpec((B, L * D), lambda i: (0, 0)),
        scratch_shapes=[pltpu.VMEM((L * B, 32), jnp.float32)],
        compiler_params=pltpu.CompilerParams(
            dimension_semantics=("arbitrary",),
            vmem_limit_bytes=32 * 1024 * 1024),
    )(*args)

    return out.reshape(B, 1, L, D)


if __name__ == "__main__":
    LENGTH, DICT_SIZE, BATCH = 8, 16, 2

    key = jax.random.PRNGKey(0)
    pkey, xkey = jax.random.split(key)
    params = init_params(pkey, LENGTH, DICT_SIZE)
    X = jax.random.normal(xkey, (BATCH, 1, LENGTH, DICT_SIZE), jnp.float32)

    # logits path
    out = generator_v2_forward(params, X, logits=True)
    out = jax.block_until_ready(out)
    assert out.shape == (BATCH, 1, LENGTH, DICT_SIZE), out.shape
    assert bool(jnp.all(jnp.isfinite(out)))

    # fused softmax path
    probs = generator_v2_forward(params, X, logits=False)
    probs = jax.block_until_ready(probs)
    assert probs.shape == (BATCH, 1, LENGTH, DICT_SIZE), probs.shape
    assert bool(jnp.all(jnp.isfinite(probs)))
    assert bool(jnp.allclose(probs.sum(axis=3), 1.0, atol=1e-2))

    print("KERNEL_OK")
</pallas_src>

<mosaic_0001>
module attributes {stable_mosaic.version = 11 : i64} {
  func.func @generator_kernel(%arg0: i32, %arg1: memref<16x16xbf16, #tpu.memory_space<vmem>>, %arg2: memref<16x4xbf16, #tpu.memory_space<vmem>>, %arg3: memref<4x16xbf16, #tpu.memory_space<vmem>>, %arg4: memref<16x32xbf16, #tpu.memory_space<vmem>>, %arg5: memref<32x64xbf16, #tpu.memory_space<vmem>>, %arg6: memref<64x64xbf16, #tpu.memory_space<vmem>>, %arg7: memref<64x32xbf16, #tpu.memory_space<vmem>>, %arg8: memref<8x32x32xbf16, #tpu.memory_space<vmem>>, %arg9: memref<32x64xbf16, #tpu.memory_space<vmem>>, %arg10: memref<64x128xbf16, #tpu.memory_space<vmem>>, %arg11: memref<6x128xf32, #tpu.memory_space<vmem>>, %arg12: memref<3x128xf32, #tpu.memory_space<vmem>>, %arg13: memref<2x128xf32, #tpu.memory_space<vmem>>, %arg14: memref<16x32xf32, #tpu.memory_space<vmem>>) attributes {dimension_semantics = [#tpu.dimension_semantics<arbitrary>], iteration_bounds = array<i64: 1>, scalar_prefetch = 0 : i64, scratch_operands = 1 : i64, tpu.core_type = #tpu.core_type<tc>, window_params = [{pipeline_mode = #tpu.pipeline_mode<synchronous>, transform_indices = @transform_0, window_bounds = array<i64: 16, 16>}, {pipeline_mode = #tpu.pipeline_mode<synchronous>, transform_indices = @transform_1, window_bounds = array<i64: 16, 4>}, {pipeline_mode = #tpu.pipeline_mode<synchronous>, transform_indices = @transform_2, window_bounds = array<i64: 4, 16>}, {pipeline_mode = #tpu.pipeline_mode<synchronous>, transform_indices = @transform_3, window_bounds = array<i64: 16, 32>}, {pipeline_mode = #tpu.pipeline_mode<synchronous>, transform_indices = @transform_4, window_bounds = array<i64: 32, 64>}, {pipeline_mode = #tpu.pipeline_mode<synchronous>, transform_indices = @transform_5, window_bounds = array<i64: 64, 64>}, {pipeline_mode = #tpu.pipeline_mode<synchronous>, transform_indices = @transform_6, window_bounds = array<i64: 64, 32>}, {pipeline_mode = #tpu.pipeline_mode<synchronous>, transform_indices = @transform_7, window_bounds = array<i64: 8, 32, 32>}, {pipeline_mode = #tpu.pipeline_mode<synchronous>, transform_indices = @transform_8, window_bounds = array<i64: 32, 64>}, {pipeline_mode = #tpu.pipeline_mode<synchronous>, transform_indices = @transform_9, window_bounds = array<i64: 64, 128>}, {pipeline_mode = #tpu.pipeline_mode<synchronous>, transform_indices = @transform_10, window_bounds = array<i64: 6, 128>}, {pipeline_mode = #tpu.pipeline_mode<synchronous>, transform_indices = @transform_11, window_bounds = array<i64: 3, 128>}, {pipeline_mode = #tpu.pipeline_mode<synchronous>, transform_indices = @transform_12, window_bounds = array<i64: 2, 128>}]} {
    %c0 = arith.constant 0 : index
    %c0_0 = arith.constant 0 : index
    %0 = vector.load %arg1[%c0, %c0_0] : memref<16x16xbf16, #tpu.memory_space<vmem>>, vector<16x16xbf16>
    %c0_1 = arith.constant 0 : index
    %c0_2 = arith.constant 0 : index
    %1 = vector.load %arg2[%c0_1, %c0_2] : memref<16x4xbf16, #tpu.memory_space<vmem>>, vector<16x4xbf16>
    %cst = arith.constant dense<0.000000e+00> : vector<16x4xf32>
    %2 = tpu.matmul %0, %1, %cst {dimension_numbers = #tpu.dot_dimension_numbers<[1], [0], [0], [1], [0, 0, 1, 1], [], []>} : vector<16x16xbf16>, vector<16x4xbf16>, vector<16x4xf32> -> vector<16x4xf32>
    %c0_3 = arith.constant 0 : index
    %c0_4 = arith.constant 0 : index
    %3 = vector.load %arg11[%c0_3, %c0_4] : memref<6x128xf32, #tpu.memory_space<vmem>>, vector<1x4xf32>
    %4 = vector.broadcast %3 : vector<1x4xf32> to vector<16x4xf32>
    %5 = arith.addf %2, %4 : vector<16x4xf32>
    %cst_5 = arith.constant 0.000000e+00 : f32
    %6 = vector.broadcast %cst_5 : f32 to vector<16x4xf32>
    %7 = arith.maximumf %5, %6 : vector<16x4xf32>
    %8 = arith.truncf %7 : vector<16x4xf32> to vector<16x4xbf16>
    %c0_6 = arith.constant 0 : index
    %c0_7 = arith.constant 0 : index
    %9 = vector.load %arg3[%c0_6, %c0_7] : memref<4x16xbf16, #tpu.memory_space<vmem>>, vector<4x16xbf16>
    %cst_8 = arith.constant dense<0.000000e+00> : vector<16x16xf32>
    %10 = tpu.matmul %8, %9, %cst_8 {dimension_numbers = #tpu.dot_dimension_numbers<[1], [0], [0], [1], [0, 0, 1, 1], [], []>} : vector<16x4xbf16>, vector<4x16xbf16>, vector<16x16xf32> -> vector<16x16xf32>
    %c1 = arith.constant 1 : index
    %c0_9 = arith.constant 0 : index
    %11 = vector.load %arg11[%c1, %c0_9] : memref<6x128xf32, #tpu.memory_space<vmem>>, vector<1x16xf32>
    %12 = vector.broadcast %11 : vector<1x16xf32> to vector<16x16xf32>
    %13 = arith.addf %10, %12 : vector<16x16xf32>
    %cst_10 = arith.constant dense<0.000000e+00> : vector<16xf32>
    %14 = vector.multi_reduction <add>, %13, %cst_10 [0] : vector<16x16xf32> to vector<16xf32>
    %15 = vector.shape_cast %14 : vector<16xf32> to vector<1x16xf32>
    %cst_11 = arith.constant 1.600000e+01 : f32
    %16 = vector.broadcast %cst_11 : f32 to vector<1x16xf32>
    %17 = arith.divf %15, %16 : vector<1x16xf32>
    %18 = arith.mulf %13, %13 : vector<16x16xf32>
    %cst_12 = arith.constant dense<0.000000e+00> : vector<16xf32>
    %19 = vector.multi_reduction <add>, %18, %cst_12 [0] : vector<16x16xf32> to vector<16xf32>
    %20 = vector.shape_cast %19 : vector<16xf32> to vector<1x16xf32>
    %cst_13 = arith.constant 1.600000e+01 : f32
    %21 = vector.broadcast %cst_13 : f32 to vector<1x16xf32>
    %22 = arith.divf %20, %21 : vector<1x16xf32>
    %23 = arith.mulf %17, %17 : vector<1x16xf32>
    %24 = arith.subf %22, %23 : vector<1x16xf32>
    %cst_14 = arith.constant 0.000000e+00 : f32
    %25 = vector.broadcast %cst_14 : f32 to vector<1x16xf32>
    %26 = arith.maximumf %24, %25 : vector<1x16xf32>
    %27 = vector.broadcast %17 : vector<1x16xf32> to vector<16x16xf32>
    %28 = arith.subf %13, %27 : vector<16x16xf32>
    %cst_15 = arith.constant 9.99999974E-6 : f32
    %29 = vector.broadcast %cst_15 : f32 to vector<1x16xf32>
    %30 = arith.addf %26, %29 : vector<1x16xf32>
    %31 = math.rsqrt %30 : vector<1x16xf32>
    %32 = vector.broadcast %31 : vector<1x16xf32> to vector<16x16xf32>
    %33 = arith.mulf %28, %32 : vector<16x16xf32>
    %cst_16 = arith.constant 0.000000e+00 : f32
    %34 = vector.broadcast %cst_16 : f32 to vector<16x16xf32>
    %35 = arith.cmpf ogt, %33, %34 : vector<16x16xf32>
    %cst_17 = arith.constant 0.00999999977 : f32
    %36 = vector.broadcast %cst_17 : f32 to vector<16x16xf32>
    %37 = arith.mulf %36, %33 : vector<16x16xf32>
    %38 = arith.select %35, %33, %37 : vector<16x16xi1>, vector<16x16xf32>
    %39 = arith.truncf %38 : vector<16x16xf32> to vector<16x16xbf16>
    %c0_18 = arith.constant 0 : index
    %c0_19 = arith.constant 0 : index
    %40 = vector.load %arg4[%c0_18, %c0_19] : memref<16x32xbf16, #tpu.memory_space<vmem>>, vector<16x32xbf16>
    %cst_20 = arith.constant dense<0.000000e+00> : vector<16x32xf32>
    %41 = tpu.matmul %39, %40, %cst_20 {dimension_numbers = #tpu.dot_dimension_numbers<[1], [0], [0], [1], [0, 0, 1, 1], [], []>} : vector<16x16xbf16>, vector<16x32xbf16>, vector<16x32xf32> -> vector<16x32xf32>
    %c2 = arith.constant 2 : index
    %c0_21 = arith.constant 0 : index
    %42 = vector.load %arg11[%c2, %c0_21] : memref<6x128xf32, #tpu.memory_space<vmem>>, vector<1x32xf32>
    %43 = vector.broadcast %42 : vector<1x32xf32> to vector<16x32xf32>
    %44 = arith.addf %41, %43 : vector<16x32xf32>
    %cst_22 = arith.constant dense<0.000000e+00> : vector<32xf32>
    %45 = vector.multi_reduction <add>, %44, %cst_22 [0] : vector<16x32xf32> to vector<32xf32>
    %46 = vector.shape_cast %45 : vector<32xf32> to vector<1x32xf32>
    %cst_23 = arith.constant 1.600000e+01 : f32
    %47 = vector.broadcast %cst_23 : f32 to vector<1x32xf32>
    %48 = arith.divf %46, %47 : vector<1x32xf32>
    %49 = arith.mulf %44, %44 : vector<16x32xf32>
    %cst_24 = arith.constant dense<0.000000e+00> : vector<32xf32>
    %50 = vector.multi_reduction <add>, %49, %cst_24 [0] : vector<16x32xf32> to vector<32xf32>
    %51 = vector.shape_cast %50 : vector<32xf32> to vector<1x32xf32>
    %cst_25 = arith.constant 1.600000e+01 : f32
    %52 = vector.broadcast %cst_25 : f32 to vector<1x32xf32>
    %53 = arith.divf %51, %52 : vector<1x32xf32>
    %54 = arith.mulf %48, %48 : vector<1x32xf32>
    %55 = arith.subf %53, %54 : vector<1x32xf32>
    %cst_26 = arith.constant 0.000000e+00 : f32
    %56 = vector.broadcast %cst_26 : f32 to vector<1x32xf32>
    %57 = arith.maximumf %55, %56 : vector<1x32xf32>
    %58 = vector.broadcast %48 : vector<1x32xf32> to vector<16x32xf32>
    %59 = arith.subf %44, %58 : vector<16x32xf32>
    %cst_27 = arith.constant 9.99999974E-6 : f32
    %60 = vector.broadcast %cst_27 : f32 to vector<1x32xf32>
    %61 = arith.addf %57, %60 : vector<1x32xf32>
    %62 = math.rsqrt %61 : vector<1x32xf32>
    %63 = vector.broadcast %62 : vector<1x32xf32> to vector<16x32xf32>
    %64 = arith.mulf %59, %63 : vector<16x32xf32>
    %cst_28 = arith.constant 0.000000e+00 : f32
    %65 = vector.broadcast %cst_28 : f32 to vector<16x32xf32>
    %66 = arith.cmpf ogt, %64, %65 : vector<16x32xf32>
    %cst_29 = arith.constant 0.00999999977 : f32
    %67 = vector.broadcast %cst_29 : f32 to vector<16x32xf32>
    %68 = arith.mulf %67, %64 : vector<16x32xf32>
    %69 = arith.select %66, %64, %68 : vector<16x32xi1>, vector<16x32xf32>
    %70 = arith.truncf %69 : vector<16x32xf32> to vector<16x32xbf16>
    %c0_30 = arith.constant 0 : index
    %c0_31 = arith.constant 0 : index
    %71 = vector.load %arg5[%c0_30, %c0_31] : memref<32x64xbf16, #tpu.memory_space<vmem>>, vector<32x64xbf16>
    %cst_32 = arith.constant dense<0.000000e+00> : vector<16x64xf32>
    %72 = tpu.matmul %70, %71, %cst_32 {dimension_numbers = #tpu.dot_dimension_numbers<[1], [0], [0], [1], [0, 0, 1, 1], [], []>} : vector<16x32xbf16>, vector<32x64xbf16>, vector<16x64xf32> -> vector<16x64xf32>
    %c3 = arith.constant 3 : index
    %c0_33 = arith.constant 0 : index
    %73 = vector.load %arg11[%c3, %c0_33] : memref<6x128xf32, #tpu.memory_space<vmem>>, vector<1x64xf32>
    %74 = vector.broadcast %73 : vector<1x64xf32> to vector<16x64xf32>
    %75 = arith.addf %72, %74 : vector<16x64xf32>
    %cst_34 = arith.constant dense<0.000000e+00> : vector<64xf32>
    %76 = vector.multi_reduction <add>, %75, %cst_34 [0] : vector<16x64xf32> to vector<64xf32>
    %77 = vector.shape_cast %76 : vector<64xf32> to vector<1x64xf32>
    %cst_35 = arith.constant 1.600000e+01 : f32
    %78 = vector.broadcast %cst_35 : f32 to vector<1x64xf32>
    %79 = arith.divf %77, %78 : vector<1x64xf32>
    %80 = arith.mulf %75, %75 : vector<16x64xf32>
    %cst_36 = arith.constant dense<0.000000e+00> : vector<64xf32>
    %81 = vector.multi_reduction <add>, %80, %cst_36 [0] : vector<16x64xf32> to vector<64xf32>
    %82 = vector.shape_cast %81 : vector<64xf32> to vector<1x64xf32>
    %cst_37 = arith.constant 1.600000e+01 : f32
    %83 = vector.broadcast %cst_37 : f32 to vector<1x64xf32>
    %84 = arith.divf %82, %83 : vector<1x64xf32>
    %85 = arith.mulf %79, %79 : vector<1x64xf32>
    %86 = arith.subf %84, %85 : vector<1x64xf32>
    %cst_38 = arith.constant 0.000000e+00 : f32
    %87 = vector.broadcast %cst_38 : f32 to vector<1x64xf32>
    %88 = arith.maximumf %86, %87 : vector<1x64xf32>
    %89 = vector.broadcast %79 : vector<1x64xf32> to vector<16x64xf32>
    %90 = arith.subf %75, %89 : vector<16x64xf32>
    %cst_39 = arith.constant 9.99999974E-6 : f32
    %91 = vector.broadcast %cst_39 : f32 to vector<1x64xf32>
    %92 = arith.addf %88, %91 : vector<1x64xf32>
    %93 = math.rsqrt %92 : vector<1x64xf32>
    %94 = vector.broadcast %93 : vector<1x64xf32> to vector<16x64xf32>
    %95 = arith.mulf %90, %94 : vector<16x64xf32>
    %cst_40 = arith.constant 0.000000e+00 : f32
    %96 = vector.broadcast %cst_40 : f32 to vector<16x64xf32>
    %97 = arith.cmpf ogt, %95, %96 : vector<16x64xf32>
    %cst_41 = arith.constant 0.00999999977 : f32
    %98 = vector.broadcast %cst_41 : f32 to vector<16x64xf32>
    %99 = arith.mulf %98, %95 : vector<16x64xf32>
    %100 = arith.select %97, %95, %99 : vector<16x64xi1>, vector<16x64xf32>
    %101 = arith.truncf %100 : vector<16x64xf32> to vector<16x64xbf16>
    %c0_42 = arith.constant 0 : index
    %c0_43 = arith.constant 0 : index
    %102 = vector.load %arg6[%c0_42, %c0_43] : memref<64x64xbf16, #tpu.memory_space<vmem>>, vector<64x64xbf16>
    %cst_44 = arith.constant dense<0.000000e+00> : vector<16x64xf32>
    %103 = tpu.matmul %101, %102, %cst_44 {dimension_numbers = #tpu.dot_dimension_numbers<[1], [0], [0], [1], [0, 0, 1, 1], [], []>} : vector<16x64xbf16>, vector<64x64xbf16>, vector<16x64xf32> -> vector<16x64xf32>
    %c4 = arith.constant 4 : index
    %c0_45 = arith.constant 0 : index
    %104 = vector.load %arg11[%c4, %c0_45] : memref<6x128xf32, #tpu.memory_space<vmem>>, vector<1x64xf32>
    %105 = vector.broadcast %104 : vector<1x64xf32> to vector<16x64xf32>
    %106 = arith.addf %103, %105 : vector<16x64xf32>
    %cst_46 = arith.constant dense<0.000000e+00> : vector<64xf32>
    %107 = vector.multi_reduction <add>, %106, %cst_46 [0] : vector<16x64xf32> to vector<64xf32>
    %108 = vector.shape_cast %107 : vector<64xf32> to vector<1x64xf32>
    %cst_47 = arith.constant 1.600000e+01 : f32
    %109 = vector.broadcast %cst_47 : f32 to vector<1x64xf32>
    %110 = arith.divf %108, %109 : vector<1x64xf32>
    %111 = arith.mulf %106, %106 : vector<16x64xf32>
    %cst_48 = arith.constant dense<0.000000e+00> : vector<64xf32>
    %112 = vector.multi_reduction <add>, %111, %cst_48 [0] : vector<16x64xf32> to vector<64xf32>
    %113 = vector.shape_cast %112 : vector<64xf32> to vector<1x64xf32>
    %cst_49 = arith.constant 1.600000e+01 : f32
    %114 = vector.broadcast %cst_49 : f32 to vector<1x64xf32>
    %115 = arith.divf %113, %114 : vector<1x64xf32>
    %116 = arith.mulf %110, %110 : vector<1x64xf32>
    %117 = arith.subf %115, %116 : vector<1x64xf32>
    %cst_50 = arith.constant 0.000000e+00 : f32
    %118 = vector.broadcast %cst_50 : f32 to vector<1x64xf32>
    %119 = arith.maximumf %117, %118 : vector<1x64xf32>
    %120 = vector.broadcast %110 : vector<1x64xf32> to vector<16x64xf32>
    %121 = arith.subf %106, %120 : vector<16x64xf32>
    %cst_51 = arith.constant 9.99999974E-6 : f32
    %122 = vector.broadcast %cst_51 : f32 to vector<1x64xf32>
    %123 = arith.addf %119, %122 : vector<1x64xf32>
    %124 = math.rsqrt %123 : vector<1x64xf32>
    %125 = vector.broadcast %124 : vector<1x64xf32> to vector<16x64xf32>
    %126 = arith.mulf %121, %125 : vector<16x64xf32>
    %cst_52 = arith.constant 0.000000e+00 : f32
    %127 = vector.broadcast %cst_52 : f32 to vector<16x64xf32>
    %128 = arith.cmpf ogt, %126, %127 : vector<16x64xf32>
    %cst_53 = arith.constant 0.00999999977 : f32
    %129 = vector.broadcast %cst_53 : f32 to vector<16x64xf32>
    %130 = arith.mulf %129, %126 : vector<16x64xf32>
    %131 = arith.select %128, %126, %130 : vector<16x64xi1>, vector<16x64xf32>
    %132 = arith.truncf %131 : vector<16x64xf32> to vector<16x64xbf16>
    %c0_54 = arith.constant 0 : index
    %c0_55 = arith.constant 0 : index
    %133 = vector.load %arg7[%c0_54, %c0_55] : memref<64x32xbf16, #tpu.memory_space<vmem>>, vector<64x32xbf16>
    %cst_56 = arith.constant dense<0.000000e+00> : vector<16x32xf32>
    %134 = tpu.matmul %132, %133, %cst_56 {dimension_numbers = #tpu.dot_dimension_numbers<[1], [0], [0], [1], [0, 0, 1, 1], [], []>} : vector<16x64xbf16>, vector<64x32xbf16>, vector<16x32xf32> -> vector<16x32xf32>
    %c5 = arith.constant 5 : index
    %c0_57 = arith.constant 0 : index
    %135 = vector.load %arg11[%c5, %c0_57] : memref<6x128xf32, #tpu.memory_space<vmem>>, vector<1x32xf32>
    %136 = vector.broadcast %135 : vector<1x32xf32> to vector<16x32xf32>
    %137 = arith.addf %134, %136 : vector<16x32xf32>
    %cst_58 = arith.constant dense<0.000000e+00> : vector<32xf32>
    %138 = vector.multi_reduction <add>, %137, %cst_58 [0] : vector<16x32xf32> to vector<32xf32>
    %139 = vector.shape_cast %138 : vector<32xf32> to vector<1x32xf32>
    %cst_59 = arith.constant 1.600000e+01 : f32
    %140 = vector.broadcast %cst_59 : f32 to vector<1x32xf32>
    %141 = arith.divf %139, %140 : vector<1x32xf32>
    %142 = arith.mulf %137, %137 : vector<16x32xf32>
    %cst_60 = arith.constant dense<0.000000e+00> : vector<32xf32>
    %143 = vector.multi_reduction <add>, %142, %cst_60 [0] : vector<16x32xf32> to vector<32xf32>
    %144 = vector.shape_cast %143 : vector<32xf32> to vector<1x32xf32>
    %cst_61 = arith.constant 1.600000e+01 : f32
    %145 = vector.broadcast %cst_61 : f32 to vector<1x32xf32>
    %146 = arith.divf %144, %145 : vector<1x32xf32>
    %147 = arith.mulf %141, %141 : vector<1x32xf32>
    %148 = arith.subf %146, %147 : vector<1x32xf32>
    %cst_62 = arith.constant 0.000000e+00 : f32
    %149 = vector.broadcast %cst_62 : f32 to vector<1x32xf32>
    %150 = arith.maximumf %148, %149 : vector<1x32xf32>
    %151 = vector.broadcast %141 : vector<1x32xf32> to vector<16x32xf32>
    %152 = arith.subf %137, %151 : vector<16x32xf32>
    %cst_63 = arith.constant 9.99999974E-6 : f32
    %153 = vector.broadcast %cst_63 : f32 to vector<1x32xf32>
    %154 = arith.addf %150, %153 : vector<1x32xf32>
    %155 = math.rsqrt %154 : vector<1x32xf32>
    %156 = vector.broadcast %155 : vector<1x32xf32> to vector<16x32xf32>
    %157 = arith.mulf %152, %156 : vector<16x32xf32>
    %cst_64 = arith.constant 0.000000e+00 : f32
    %158 = vector.broadcast %cst_64 : f32 to vector<16x32xf32>
    %159 = arith.cmpf ogt, %157, %158 : vector<16x32xf32>
    %cst_65 = arith.constant 0.00999999977 : f32
    %160 = vector.broadcast %cst_65 : f32 to vector<16x32xf32>
    %161 = arith.mulf %160, %157 : vector<16x32xf32>
    %162 = arith.select %159, %157, %161 : vector<16x32xi1>, vector<16x32xf32>
    %c0_66 = arith.constant 0 : index
    %c0_67 = arith.constant 0 : index
    %163 = vector.load %arg14[%c0_66, %c0_67] : memref<16x32xf32, #tpu.memory_space<vmem>>, vector<16x32xf32>
    tpu.vector_store %arg14[%c0_66, %c0_67], %162 {strides = array<i32>} : memref<16x32xf32, #tpu.memory_space<vmem>>, vector<16x32xf32>,
    %cst_68 = arith.constant 0.000000e+00 : f32
    %164 = vector.broadcast %cst_68 : f32 to vector<2x32xf32>
    %c0_69 = arith.constant 0 : index
    %c0_70 = arith.constant 0 : index
    %165 = vector.load %arg14[%c0_69, %c0_70] : memref<16x32xf32, #tpu.memory_space<vmem>>, vector<2x32xf32>
    %166 = arith.truncf %165 : vector<2x32xf32> to vector<2x32xbf16>
    %c0_71 = arith.constant 0 : index
    %c0_72 = arith.constant 0 : index
    %c0_73 = arith.constant 0 : index
    %167 = vector.load %arg8[%c0_71, %c0_72, %c0_73] : memref<8x32x32xbf16, #tpu.memory_space<vmem>>, vector<1x32x32xbf16>
    %168 = vector.shape_cast %167 : vector<1x32x32xbf16> to vector<32x32xbf16>
    %cst_74 = arith.constant dense<0.000000e+00> : vector<2x32xf32>
    %169 = tpu.matmul %166, %168, %cst_74 {dimension_numbers = #tpu.dot_dimension_numbers<[1], [0], [0], [1], [0, 0, 1, 1], [], []>} : vector<2x32xbf16>, vector<32x32xbf16>, vector<2x32xf32> -> vector<2x32xf32>
    %170 = arith.addf %164, %169 : vector<2x32xf32>
    %c2_75 = arith.constant 2 : index
    %c0_76 = arith.constant 0 : index
    %171 = vector.load %arg14[%c2_75, %c0_76] : memref<16x32xf32, #tpu.memory_space<vmem>>, vector<2x32xf32>
    %172 = arith.truncf %171 : vector<2x32xf32> to vector<2x32xbf16>
    %c1_77 = arith.constant 1 : index
    %c0_78 = arith.constant 0 : index
    %c0_79 = arith.constant 0 : index
    %173 = vector.load %arg8[%c1_77, %c0_78, %c0_79] : memref<8x32x32xbf16, #tpu.memory_space<vmem>>, vector<1x32x32xbf16>
    %174 = vector.shape_cast %173 : vector<1x32x32xbf16> to vector<32x32xbf16>
    %cst_80 = arith.constant dense<0.000000e+00> : vector<2x32xf32>
    %175 = tpu.matmul %172, %174, %cst_80 {dimension_numbers = #tpu.dot_dimension_numbers<[1], [0], [0], [1], [0, 0, 1, 1], [], []>} : vector<2x32xbf16>, vector<32x32xbf16>, vector<2x32xf32> -> vector<2x32xf32>
    %176 = arith.addf %170, %175 : vector<2x32xf32>
    %c4_81 = arith.constant 4 : index
    %c0_82 = arith.constant 0 : index
    %177 = vector.load %arg14[%c4_81, %c0_82] : memref<16x32xf32, #tpu.memory_space<vmem>>, vector<2x32xf32>
    %178 = arith.truncf %177 : vector<2x32xf32> to vector<2x32xbf16>
    %c2_83 = arith.constant 2 : index
    %c0_84 = arith.constant 0 : index
    %c0_85 = arith.constant 0 : index
    %179 = vector.load %arg8[%c2_83, %c0_84, %c0_85] : memref<8x32x32xbf16, #tpu.memory_space<vmem>>, vector<1x32x32xbf16>
    %180 = vector.shape_cast %179 : vector<1x32x32xbf16> to vector<32x32xbf16>
    %cst_86 = arith.constant dense<0.000000e+00> : vector<2x32xf32>
    %181 = tpu.matmul %178, %180, %cst_86 {dimension_numbers = #tpu.dot_dimension_numbers<[1], [0], [0], [1], [0, 0, 1, 1], [], []>} : vector<2x32xbf16>, vector<32x32xbf16>, vector<2x32xf32> -> vector<2x32xf32>
    %182 = arith.addf %176, %181 : vector<2x32xf32>
    %c6 = arith.constant 6 : index
    %c0_87 = arith.constant 0 : index
    %183 = vector.load %arg14[%c6, %c0_87] : memref<16x32xf32, #tpu.memory_space<vmem>>, vector<2x32xf32>
    %184 = arith.truncf %183 : vector<2x32xf32> to vector<2x32xbf16>
    %c3_88 = arith.constant 3 : index
    %c0_89 = arith.constant 0 : index
    %c0_90 = arith.constant 0 : index
    %185 = vector.load %arg8[%c3_88, %c0_89, %c0_90] : memref<8x32x32xbf16, #tpu.memory_space<vmem>>, vector<1x32x32xbf16>
    %186 = vector.shape_cast %185 : vector<1x32x32xbf16> to vector<32x32xbf16>
    %cst_91 = arith.constant dense<0.000000e+00> : vector<2x32xf32>
    %187 = tpu.matmul %184, %186, %cst_91 {dimension_numbers = #tpu.dot_dimension_numbers<[1], [0], [0], [1], [0, 0, 1, 1], [], []>} : vector<2x32xbf16>, vector<32x32xbf16>, vector<2x32xf32> -> vector<2x32xf32>
    %188 = arith.addf %182, %187 : vector<2x32xf32>
    %c8 = arith.constant 8 : index
    %c0_92 = arith.constant 0 : index
    %189 = vector.load %arg14[%c8, %c0_92] : memref<16x32xf32, #tpu.memory_space<vmem>>, vector<2x32xf32>
    %190 = arith.truncf %189 : vector<2x32xf32> to vector<2x32xbf16>
    %c4_93 = arith.constant 4 : index
    %c0_94 = arith.constant 0 : index
    %c0_95 = arith.constant 0 : index
    %191 = vector.load %arg8[%c4_93, %c0_94, %c0_95] : memref<8x32x32xbf16, #tpu.memory_space<vmem>>, vector<1x32x32xbf16>
    %192 = vector.shape_cast %191 : vector<1x32x32xbf16> to vector<32x32xbf16>
    %cst_96 = arith.constant dense<0.000000e+00> : vector<2x32xf32>
    %193 = tpu.matmul %190, %192, %cst_96 {dimension_numbers = #tpu.dot_dimension_numbers<[1], [0], [0], [1], [0, 0, 1, 1], [], []>} : vector<2x32xbf16>, vector<32x32xbf16>, vector<2x32xf32> -> vector<2x32xf32>
    %194 = arith.addf %188, %193 : vector<2x32xf32>
    %c10 = arith.constant 10 : index
    %c0_97 = arith.constant 0 : index
    %195 = vector.load %arg14[%c10, %c0_97] : memref<16x32xf32, #tpu.memory_space<vmem>>, vector<2x32xf32>
    %196 = arith.truncf %195 : vector<2x32xf32> to vector<2x32xbf16>
    %c5_98 = arith.constant 5 : index
    %c0_99 = arith.constant 0 : index
    %c0_100 = arith.constant 0 : index
    %197 = vector.load %arg8[%c5_98, %c0_99, %c0_100] : memref<8x32x32xbf16, #tpu.memory_space<vmem>>, vector<1x32x32xbf16>
    %198 = vector.shape_cast %197 : vector<1x32x32xbf16> to vector<32x32xbf16>
    %cst_101 = arith.constant dense<0.000000e+00> : vector<2x32xf32>
    %199 = tpu.matmul %196, %198, %cst_101 {dimension_numbers = #tpu.dot_dimension_numbers<[1], [0], [0], [1], [0, 0, 1, 1], [], []>} : vector<2x32xbf16>, vector<32x32xbf16>, vector<2x32xf32> -> vector<2x32xf32>
    %200 = arith.addf %194, %199 : vector<2x32xf32>
    %c12 = arith.constant 12 : index
    %c0_102 = arith.constant 0 : index
    %201 = vector.load %arg14[%c12, %c0_102] : memref<16x32xf32, #tpu.memory_space<vmem>>, vector<2x32xf32>
    %202 = arith.truncf %201 : vector<2x32xf32> to vector<2x32xbf16>
    %c6_103 = arith.constant 6 : index
    %c0_104 = arith.constant 0 : index
    %c0_105 = arith.constant 0 : index
    %203 = vector.load %arg8[%c6_103, %c0_104, %c0_105] : memref<8x32x32xbf16, #tpu.memory_space<vmem>>, vector<1x32x32xbf16>
    %204 = vector.shape_cast %203 : vector<1x32x32xbf16> to vector<32x32xbf16>
    %cst_106 = arith.constant dense<0.000000e+00> : vector<2x32xf32>
    %205 = tpu.matmul %202, %204, %cst_106 {dimension_numbers = #tpu.dot_dimension_numbers<[1], [0], [0], [1], [0, 0, 1, 1], [], []>} : vector<2x32xbf16>, vector<32x32xbf16>, vector<2x32xf32> -> vector<2x32xf32>
    %206 = arith.addf %200, %205 : vector<2x32xf32>
    %c14 = arith.constant 14 : index
    %c0_107 = arith.constant 0 : index
    %207 = vector.load %arg14[%c14, %c0_107] : memref<16x32xf32, #tpu.memory_space<vmem>>, vector<2x32xf32>
    %208 = arith.truncf %207 : vector<2x32xf32> to vector<2x32xbf16>
    %c7 = arith.constant 7 : index
    %c0_108 = arith.constant 0 : index
    %c0_109 = arith.constant 0 : index
    %209 = vector.load %arg8[%c7, %c0_108, %c0_109] : memref<8x32x32xbf16, #tpu.memory_space<vmem>>, vector<1x32x32xbf16>
    %210 = vector.shape_cast %209 : vector<1x32x32xbf16> to vector<32x32xbf16>
    %cst_110 = arith.constant dense<0.000000e+00> : vector<2x32xf32>
    %211 = tpu.matmul %208, %210, %cst_110 {dimension_numbers = #tpu.dot_dimension_numbers<[1], [0], [0], [1], [0, 0, 1, 1], [], []>} : vector<2x32xbf16>, vector<32x32xbf16>, vector<2x32xf32> -> vector<2x32xf32>
    %212 = arith.addf %206, %211 : vector<2x32xf32>
    %c0_111 = arith.constant 0 : index
    %c0_112 = arith.constant 0 : index
    %213 = vector.load %arg12[%c0_111, %c0_112] : memref<3x128xf32, #tpu.memory_space<vmem>>, vector<1x32xf32>
    %214 = vector.broadcast %213 : vector<1x32xf32> to vector<2x32xf32>
    %215 = arith.addf %212, %214 : vector<2x32xf32>
    %cst_113 = arith.constant 0.000000e+00 : f32
    %216 = vector.broadcast %cst_113 : f32 to vector<2x32xf32>
    %217 = arith.cmpf ogt, %215, %216 : vector<2x32xf32>
    %cst_114 = arith.constant 0.00999999977 : f32
    %218 = vector.broadcast %cst_114 : f32 to vector<2x32xf32>
    %219 = arith.mulf %218, %215 : vector<2x32xf32>
    %220 = arith.select %217, %215, %219 : vector<2x32xi1>, vector<2x32xf32>
    %221 = arith.truncf %220 : vector<2x32xf32> to vector<2x32xbf16>
    %c0_115 = arith.constant 0 : index
    %c0_116 = arith.constant 0 : index
    %222 = vector.load %arg9[%c0_115, %c0_116] : memref<32x64xbf16, #tpu.memory_space<vmem>>, vector<32x64xbf16>
    %cst_117 = arith.constant dense<0.000000e+00> : vector<2x64xf32>
    %223 = tpu.matmul %221, %222, %cst_117 {dimension_numbers = #tpu.dot_dimension_numbers<[1], [0], [0], [1], [0, 0, 1, 1], [], []>} : vector<2x32xbf16>, vector<32x64xbf16>, vector<2x64xf32> -> vector<2x64xf32>
    %c1_118 = arith.constant 1 : index
    %c0_119 = arith.constant 0 : index
    %224 = vector.load %arg12[%c1_118, %c0_119] : memref<3x128xf32, #tpu.memory_space<vmem>>, vector<1x64xf32>
    %225 = vector.broadcast %224 : vector<1x64xf32> to vector<2x64xf32>
    %226 = arith.addf %223, %225 : vector<2x64xf32>
    %cst_120 = arith.constant 0.000000e+00 : f32
    %227 = vector.broadcast %cst_120 : f32 to vector<2x64xf32>
    %228 = arith.cmpf ogt, %226, %227 : vector<2x64xf32>
    %cst_121 = arith.constant 0.00999999977 : f32
    %229 = vector.broadcast %cst_121 : f32 to vector<2x64xf32>
    %230 = arith.mulf %229, %226 : vector<2x64xf32>
    %231 = arith.select %228, %226, %230 : vector<2x64xi1>, vector<2x64xf32>
    %232 = arith.truncf %231 : vector<2x64xf32> to vector<2x64xbf16>
    %c0_122 = arith.constant 0 : index
    %c0_123 = arith.constant 0 : index
    %233 = vector.load %arg10[%c0_122, %c0_123] : memref<64x128xbf16, #tpu.memory_space<vmem>>, vector<64x128xbf16>
    %cst_124 = arith.constant dense<0.000000e+00> : vector<2x128xf32>
    %234 = tpu.matmul %232, %233, %cst_124 {dimension_numbers = #tpu.dot_dimension_numbers<[1], [0], [0], [1], [0, 0, 1, 1], [], []>} : vector<2x64xbf16>, vector<64x128xbf16>, vector<2x128xf32> -> vector<2x128xf32>
    %c2_125 = arith.constant 2 : index
    %c0_126 = arith.constant 0 : index
    %235 = vector.load %arg12[%c2_125, %c0_126] : memref<3x128xf32, #tpu.memory_space<vmem>>, vector<1x128xf32>
    %236 = vector.broadcast %235 : vector<1x128xf32> to vector<2x128xf32>
    %237 = arith.addf %234, %236 : vector<2x128xf32>
    %cst_127 = arith.constant 0.000000e+00 : f32
    %238 = vector.broadcast %cst_127 : f32 to vector<2x128xf32>
    %239 = arith.maximumf %237, %238 : vector<2x128xf32>
    %c0_128 = arith.constant 0 : index
    %c0_129 = arith.constant 0 : index
    %240 = vector.load %arg13[%c0_128, %c0_129] : memref<2x128xf32, #tpu.memory_space<vmem>>, vector<2x128xf32>
    tpu.vector_store %arg13[%c0_128, %c0_129], %239 {strides = array<i32>} : memref<2x128xf32, #tpu.memory_space<vmem>>, vector<2x128xf32>,
    return
  }
  func.func @transform_0(%arg0: i32) -> (i32, i32) {
    %c0_i32 = arith.constant 0 : i32
    %c0_i32_0 = arith.constant 0 : i32
    %c0_i32_1 = arith.constant 0 : i32
    return %c0_i32, %c0_i32_0 : i32, i32
  }
  func.func @transform_1(%arg0: i32) -> (i32, i32) {
    %c0_i32 = arith.constant 0 : i32
    %c0_i32_0 = arith.constant 0 : i32
    %c0_i32_1 = arith.constant 0 : i32
    return %c0_i32, %c0_i32_0 : i32, i32
  }
  func.func @transform_2(%arg0: i32) -> (i32, i32) {
    %c0_i32 = arith.constant 0 : i32
    %c0_i32_0 = arith.constant 0 : i32
    %c0_i32_1 = arith.constant 0 : i32
    return %c0_i32, %c0_i32_0 : i32, i32
  }
  func.func @transform_3(%arg0: i32) -> (i32, i32) {
    %c0_i32 = arith.constant 0 : i32
    %c0_i32_0 = arith.constant 0 : i32
    %c0_i32_1 = arith.constant 0 : i32
    return %c0_i32, %c0_i32_0 : i32, i32
  }
  func.func @transform_4(%arg0: i32) -> (i32, i32) {
    %c0_i32 = arith.constant 0 : i32
    %c0_i32_0 = arith.constant 0 : i32
    %c0_i32_1 = arith.constant 0 : i32
    return %c0_i32, %c0_i32_0 : i32, i32
  }
  func.func @transform_5(%arg0: i32) -> (i32, i32) {
    %c0_i32 = arith.constant 0 : i32
    %c0_i32_0 = arith.constant 0 : i32
    %c0_i32_1 = arith.constant 0 : i32
    return %c0_i32, %c0_i32_0 : i32, i32
  }
  func.func @transform_6(%arg0: i32) -> (i32, i32) {
    %c0_i32 = arith.constant 0 : i32
    %c0_i32_0 = arith.constant 0 : i32
    %c0_i32_1 = arith.constant 0 : i32
    return %c0_i32, %c0_i32_0 : i32, i32
  }
  func.func @transform_7(%arg0: i32) -> (i32, i32, i32) {
    %c0_i32 = arith.constant 0 : i32
    %c0_i32_0 = arith.constant 0 : i32
    %c0_i32_1 = arith.constant 0 : i32
    %c0_i32_2 = arith.constant 0 : i32
    return %c0_i32, %c0_i32_0, %c0_i32_1 : i32, i32, i32
  }
  func.func @transform_8(%arg0: i32) -> (i32, i32) {
    %c0_i32 = arith.constant 0 : i32
    %c0_i32_0 = arith.constant 0 : i32
    %c0_i32_1 = arith.constant 0 : i32
    return %c0_i32, %c0_i32_0 : i32, i32
  }
  func.func @transform_9(%arg0: i32) -> (i32, i32) {
    %c0_i32 = arith.constant 0 : i32
    %c0_i32_0 = arith.constant 0 : i32
    %c0_i32_1 = arith.constant 0 : i32
    return %c0_i32, %c0_i32_0 : i32, i32
  }
  func.func @transform_10(%arg0: i32) -> (i32, i32) {
    %c0_i32 = arith.constant 0 : i32
    %c0_i32_0 = arith.constant 0 : i32
    %c0_i32_1 = arith.constant 0 : i32
    return %c0_i32, %c0_i32_0 : i32, i32
  }
  func.func @transform_11(%arg0: i32) -> (i32, i32) {
    %c0_i32 = arith.constant 0 : i32
    %c0_i32_0 = arith.constant 0 : i32
    %c0_i32_1 = arith.constant 0 : i32
    return %c0_i32, %c0_i32_0 : i32, i32
  }
  func.func @transform_12(%arg0: i32) -> (i32, i32) {
    %c0_i32 = arith.constant 0 : i32
    %c0_i32_0 = arith.constant 0 : i32
    %c0_i32_1 = arith.constant 0 : i32
    return %c0_i32, %c0_i32_0 : i32, i32
  }
}

</mosaic_0001>

<llo_original>
// kernel: tpu_custom_call.1
$region0: #{tpu_custom_call.1}
  #allocation0 [shape = 'u32[]', space=smem, size = 0x4, offset = 0x4, fixed_abs, tag = 'smem constant byte address 0x4 - core index']
  #allocation1 [shape = 'u32[144,128]{1,0:T(1,128)}', space=vmem, size = 0x12000, scoped, tag = 'internal scratch']
  #allocation2 [shape = 'f32[16,32]{1,0:T(8,128)}', space=vmem, size = 0x2000, scoped, tag = 'scratch operand']
  %s0 = inlined_call_operand.hbm [shape: bf16[16,16], index: 0, kind: input, shape index: {}]
  %s1 = inlined_call_operand.vmem [shape: bf16[16,4], index: 1, kind: input, shape index: {}]
  %s2 = inlined_call_operand.hbm [shape: bf16[4,16], index: 2, kind: input, shape index: {}]
  %s3 = inlined_call_operand.hbm [shape: bf16[16,32], index: 3, kind: input, shape index: {}]
  %s4 = inlined_call_operand.hbm [shape: bf16[32,64], index: 4, kind: input, shape index: {}]
  %s5 = inlined_call_operand.vmem [shape: bf16[64,64], index: 5, kind: input, shape index: {}]
  %s6 = inlined_call_operand.vmem [shape: bf16[64,32], index: 6, kind: input, shape index: {}]
  %s7 = inlined_call_operand.hbm [shape: bf16[8,32,32], index: 7, kind: input, shape index: {}]
  %s8 = inlined_call_operand.hbm [shape: bf16[32,64], index: 8, kind: input, shape index: {}]
  %s9 = inlined_call_operand.vmem [shape: bf16[64,128], index: 9, kind: input, shape index: {}]
  %s10 = inlined_call_operand.vmem [shape: f32[6,128], index: 10, kind: input, shape index: {}]
  %s11 = inlined_call_operand.vmem [shape: f32[3,128], index: 11, kind: input, shape index: {}]
  %s12 = inlined_call_operand.hbm [shape: f32[2,128], index: 12, kind: output, shape index: {}]
  %s13 = sld [smem:[#allocation0]]
  $region82: #{tpu_custom_call.1} parent=0
    _
  %s15 = ssub.s32 1, %s13
  %s16 = scalar_select 0, %s15, %s13
  $region1: #{tpu_custom_call.1} parent=0
    #allocation3 [shape = 'u8[4096]{0}', space=vmem, size = 0x1000, scoped, tag = 'input window, operand 0, single buffered']
    #allocation4 [shape = 's32[1]{0}', space=sflag, size = 0x4, scoped, tag = 'scoped memory for tpu_custom_call.1']
    #allocation5 [shape = 's32[1]{0}', space=sflag, size = 0x4, scoped, tag = 'scoped memory for tpu_custom_call.1']
    #allocation6 [shape = 'u8[1024]{0}', space=vmem, size = 0x400, scoped, tag = 'input window, operand 2, single buffered']
    #allocation7 [shape = 's32[1]{0}', space=sflag, size = 0x4, scoped, tag = 'scoped memory for tpu_custom_call.1']
    #allocation8 [shape = 'u8[4096]{0}', space=vmem, size = 0x1000, scoped, tag = 'input window, operand 3, single buffered']
    #allocation9 [shape = 'u8[8192]{0}', space=vmem, size = 0x2000, scoped, tag = 'input window, operand 4, single buffered']
    #allocation10 [shape = 's32[1]{0}', space=sflag, size = 0x4, scoped, tag = 'scoped memory for tpu_custom_call.1']
    #allocation11 [shape = 'u8[65536]{0}', space=vmem, size = 0x10000, scoped, tag = 'input window, operand 7, single buffered']
    #allocation12 [shape = 'u8[8192]{0}', space=vmem, size = 0x2000, scoped, tag = 'input window, operand 8, single buffered']
    #allocation13 [shape = 's32[1]{0}', space=sflag, size = 0x4, scoped, tag = 'scoped memory for tpu_custom_call.1']
    #allocation14 [shape = 'u8[1024]{0}', space=vmem, size = 0x400, scoped, tag = 'output window, operand 0, single buffered']
    %17 = vsyncpa [#allocation4], 0
    %18 = vsyncpa [#allocation7], 0
    %19 = vsyncpa [#allocation10], 0
    %20 = vsyncpa [#allocation13], 0
    %21 = vsyncpa [#allocation5], 0
    // Predicated region
    $region2: #{tpu_custom_call.1} parent=1 // pred_check
      _
    $region3: #{tpu_custom_call.1} parent=1 // pred_check_branch
      %23 = sbr.rel (0) target = $region5
    $region4: #{tpu_custom_call.1} parent=1 // pred_region
      %s25 = ssub.s32 128, 128
      %26 = vsyncadd [#allocation4], %s25
      %s27 = sshll.u32 [#allocation3], 4
      %s28 = int_to_ptr.vmem [resolvable:$true] %s27
      %33 = dma.hbm_to_vmem [thread:$0]  %s0, 128, %s28, [#allocation4], 64, 64, 4
    $region5: #{tpu_custom_call.1} parent=1 // pred_fallthru
      _
    // Predicated region
    $region6: #{tpu_custom_call.1} parent=1 // pred_check
      _
    $region7: #{tpu_custom_call.1} parent=1 // pred_check_branch
      %35 = sbr.rel (0) target = $region9
    $region8: #{tpu_custom_call.1} parent=1 // pred_region
      _
    $region9: #{tpu_custom_call.1} parent=1 // pred_fallthru
      _
    // Predicated region
    $region10: #{tpu_custom_call.1} parent=1 // pred_check
      _
    $region11: #{tpu_custom_call.1} parent=1 // pred_check_branch
      %37 = sbr.rel (0) target = $region13
    $region12: #{tpu_custom_call.1} parent=1 // pred_region
      %s39 = ssub.s32 32, 32
      %40 = vsyncadd [#allocation7], %s39
      %s42 = sshll.u32 [#allocation6], 4
      %s43 = int_to_ptr.vmem [resolvable:$true] %s42
      %45 = dma.hbm_to_vmem [thread:$0]  %s2, 32, %s43, [#allocation7]
    $region13: #{tpu_custom_call.1} parent=1 // pred_fallthru
      _
    // Predicated region
    $region14: #{tpu_custom_call.1} parent=1 // pred_check
      _
    $region15: #{tpu_custom_call.1} parent=1 // pred_check_branch
      %47 = sbr.rel (0) target = $region17
    $region16: #{tpu_custom_call.1} parent=1 // pred_region
      %s49 = ssub.s32 128, 128
      %50 = vsyncadd [#allocation7], %s49
      %s51 = sshll.u32 [#allocation8], 4
      %s52 = int_to_ptr.vmem [resolvable:$true] %s51
      %57 = dma.hbm_to_vmem [thread:$0]  %s3, 128, %s52, [#allocation7], 64, 64, 4
    $region17: #{tpu_custom_call.1} parent=1 // pred_fallthru
      _
    // Predicated region
    $region18: #{tpu_custom_call.1} parent=1 // pred_check
      _
    $region19: #{tpu_custom_call.1} parent=1 // pred_check_branch
      %59 = sbr.rel (0) target = $region21
    $region20: #{tpu_custom_call.1} parent=1 // pred_region
      %s61 = ssub.s32 256, 256
      %62 = vsyncadd [#allocation10], %s61
      %s63 = sshll.u32 [#allocation9], 4
      %s64 = int_to_ptr.vmem [resolvable:$true] %s63
      %69 = dma.hbm_to_vmem [thread:$0]  %s4, 256, %s64, [#allocation10], 64, 64, 4
    $region21: #{tpu_custom_call.1} parent=1 // pred_fallthru
      _
    // Predicated region
    $region22: #{tpu_custom_call.1} parent=1 // pred_check
      _
    $region23: #{tpu_custom_call.1} parent=1 // pred_check_branch
      %71 = sbr.rel (0) target = $region25
    $region24: #{tpu_custom_call.1} parent=1 // pred_region
      _
    $region25: #{tpu_custom_call.1} parent=1 // pred_fallthru
      _
    // Predicated region
    $region26: #{tpu_custom_call.1} parent=1 // pred_check
      _
    $region27: #{tpu_custom_call.1} parent=1 // pred_check_branch
      %73 = sbr.rel (0) target = $region29
    $region28: #{tpu_custom_call.1} parent=1 // pred_region
      _
    $region29: #{tpu_custom_call.1} parent=1 // pred_fallthru
      _
    // Predicated region
    $region30: #{tpu_custom_call.1} parent=1 // pred_check
      _
    $region31: #{tpu_custom_call.1} parent=1 // pred_check_branch
      %75 = sbr.rel (0) target = $region33
    $region32: #{tpu_custom_call.1} parent=1 // pred_region
      %s77 = ssub.s32 2048, 2048
      %78 = vsyncadd [#allocation10], %s77
      %s79 = sshll.u32 [#allocation11], 4
      %s80 = int_to_ptr.vmem [resolvable:$true] %s79
      %85 = dma.hbm_to_vmem [thread:$0]  %s7, 2048, %s80, [#allocation10], 64, 64, 4
    $region33: #{tpu_custom_call.1} parent=1 // pred_fallthru
      _
    // Predicated region
    $region34: #{tpu_custom_call.1} parent=1 // pred_check
      _
    $region35: #{tpu_custom_call.1} parent=1 // pred_check_branch
      %87 = sbr.rel (0) target = $region37
    $region36: #{tpu_custom_call.1} parent=1 // pred_region
      %s89 = ssub.s32 256, 256
      %90 = vsyncadd [#allocation13], %s89
      %s91 = sshll.u32 [#allocation12], 4
      %s92 = int_to_ptr.vmem [resolvable:$true] %s91
      %97 = dma.hbm_to_vmem [thread:$0]  %s8, 256, %s92, [#allocation13], 64, 64, 4
    $region37: #{tpu_custom_call.1} parent=1 // pred_fallthru
      _
    // Predicated region
    $region38: #{tpu_custom_call.1} parent=1 // pred_check
      _
    $region39: #{tpu_custom_call.1} parent=1 // pred_check_branch
      %99 = sbr.rel (0) target = $region41
    $region40: #{tpu_custom_call.1} parent=1 // pred_region
      _
    $region41: #{tpu_custom_call.1} parent=1 // pred_fallthru
      _
    // Predicated region
    $region42: #{tpu_custom_call.1} parent=1 // pred_check
      _
    $region43: #{tpu_custom_call.1} parent=1 // pred_check_branch
      %101 = sbr.rel (0) target = $region45
    $region44: #{tpu_custom_call.1} parent=1 // pred_region
      _
    $region45: #{tpu_custom_call.1} parent=1 // pred_fallthru
      _
    // Predicated region
    $region46: #{tpu_custom_call.1} parent=1 // pred_check
      _
    $region47: #{tpu_custom_call.1} parent=1 // pred_check_branch
      %103 = sbr.rel (0) target = $region49
    $region48: #{tpu_custom_call.1} parent=1 // pred_region
      _
    $region49: #{tpu_custom_call.1} parent=1 // pred_fallthru
      _
    // Predicated region
    $region50: #{tpu_custom_call.1} parent=1 // pred_check
      _
    $region51: #{tpu_custom_call.1} parent=1 // pred_check_branch
      %105 = sbr.rel (0) target = $region53
    $region52: #{tpu_custom_call.1} parent=1 // pred_region
      %106 = dma.done [#allocation4], 128
    $region53: #{tpu_custom_call.1} parent=1 // pred_fallthru
      _
    // Predicated region
    $region54: #{tpu_custom_call.1} parent=1 // pred_check
      _
    $region55: #{tpu_custom_call.1} parent=1 // pred_check_branch
      %108 = sbr.rel (0) target = $region57
    $region56: #{tpu_custom_call.1} parent=1 // pred_region
      %109 = dma.done [#allocation7], 32
    $region57: #{tpu_custom_call.1} parent=1 // pred_fallthru
      _
    // Predicated region
    $region58: #{tpu_custom_call.1} parent=1 // pred_check
      _
    $region59: #{tpu_custom_call.1} parent=1 // pred_check_branch
      %111 = sbr.rel (0) target = $region61
    $region60: #{tpu_custom_call.1} parent=1 // pred_region
      %112 = dma.done [#allocation7], 128
    $region61: #{tpu_custom_call.1} parent=1 // pred_fallthru
      _
    // Predicated region
    $region62: #{tpu_custom_call.1} parent=1 // pred_check
      _
    $region63: #{tpu_custom_call.1} parent=1 // pred_check_branch
      %114 = sbr.rel (0) target = $region65
    $region64: #{tpu_custom_call.1} parent=1 // pred_region
      %115 = dma.done [#allocation10], 256
    $region65: #{tpu_custom_call.1} parent=1 // pred_fallthru
      _
    // Predicated region
    $region66: #{tpu_custom_call.1} parent=1 // pred_check
      _
    $region67: #{tpu_custom_call.1} parent=1 // pred_check_branch
      %117 = sbr.rel (0) target = $region69
    $region68: #{tpu_custom_call.1} parent=1 // pred_region
      %118 = dma.done [#allocation10], 2048
    $region69: #{tpu_custom_call.1} parent=1 // pred_fallthru
      _
    // Predicated region
    $region70: #{tpu_custom_call.1} parent=1 // pred_check
      _
    $region71: #{tpu_custom_call.1} parent=1 // pred_check_branch
      %120 = sbr.rel (0) target = $region73
    $region72: #{tpu_custom_call.1} parent=1 // pred_region
      %121 = dma.done [#allocation13], 256
    $region73: #{tpu_custom_call.1} parent=1 // pred_fallthru
      _
    %v123 = vld [vmem:[#allocation3] sm:$0xf]
    %v124 = vld [vmem:[#allocation3 + $0x4] sm:$0xf]
    %v125 = vld [vmem:[%s1] sm:$0xf]
    %v126 = vld [vmem:[%s1 + $0x4] sm:$0xf]
    %v127 = vld [vmem:[%s10] sm:$0x1]
    %v128 = vlaneseq
    %v129 = vshrl.u32 %v128, 7
    %v130 = vsub.s32 0, %v129
    %v131 = vrot.slane %v127, %v130
    %v134 = vunpack.c.l.b16 %v123
    %v135 = vunpack.c.l.b16 %v124
    %v136 = vpack.c.b16 %v135, %v134
    %v139 = vunpack.c.l.b16 %v125
    %v140 = vunpack.c.l.b16 %v126
    %v141 = vpack.c.b16 %v140, %v139
    %vm143 = vcmask 130048
    %v145 = vsel %vm143, %v136, 0
    %147 = vmatprep.subr.bf16.mxu0 0
    %148 = vmatpush1.bf16.msra.mxu0 %v141
    %149 = vmatprep.subr.bf16.mxu0 0
    %150 = vmatpush1.bf16.msra.mxu0 0
    %151 = vmatprep.subr.bf16.mxu0 0
    %152 = vmatpush1.bf16.msra.mxu0 0
    %153 = vmatprep.subr.bf16.mxu0 0
    %154 = vmatpush1.bf16.msra.mxu0 0
    %155 = vmatprep.subr.bf16.mxu0 0
    %156 = vmatpush1.bf16.msra.mxu0 0
    %157 = vmatprep.subr.bf16.mxu0 0
    %158 = vmatpush1.bf16.msra.mxu0 0
    %159 = vmatprep.subr.bf16.mxu0 0
    %160 = vmatpush1.bf16.msra.mxu0 0
    %161 = vmatprep.subr.bf16.mxu0 0
    %162 = vmatpush1.bf16.msra.mxu0 0
    %163 = vmatprep.subr.bf16.mxu0 0
    %164 = vmatpush1.bf16.msra.mxu0 0
    %165 = vmatprep.subr.bf16.mxu0 0
    %166 = vmatpush1.bf16.msra.mxu0 0
    %167 = vmatprep.subr.bf16.mxu0 0
    %168 = vmatpush1.bf16.msra.mxu0 0
    %169 = vmatprep.subr.bf16.mxu0 0
    %170 = vmatpush1.bf16.msra.mxu0 0
    %171 = vmatprep.subr.bf16.mxu0 0
    %172 = vmatpush1.bf16.msra.mxu0 0
    %173 = vmatprep.subr.bf16.mxu0 0
    %174 = vmatpush1.bf16.msra.mxu0 0
    %175 = vmatprep.subr.bf16.mxu0 0
    %176 = vmatpush1.bf16.msra.mxu0 0
    %177 = vmatprep.subr.bf16.mxu0 0
    %178 = vmatpush1.bf16.msra.mxu0 0
    %179 = vmatprep.mubr.bf16.mxu0 0
    %180 = vmatmul.mubr.bf16.gmra.mrb[0].mxu0 %v145
    %v181 = vpop.f32.mrb[0].mxu0
    %v182 = vadd.f32 %v131, %v181
    %v183 = vpop.f32.mrb[0].mxu0
    %v184 = vpop.f32.mrb[0].mxu0
    %v185 = vadd.f32 %v131, %v184
    %v186 = vpop.f32.mrb[0].mxu0
    %187 = vdwg.mxu0
    %v188 = vmax.f32 %v182, 0.0
    %v189 = vmax.f32 %v185, 0.0
    %v190 = vpack.c.bf16 %v189, %v188
    %v191 = vld [vmem:[#allocation6] sm:$0x3]
    %v192 = vld [vmem:[%s10 + $0x1] sm:$0x1]
    %v193 = vlaneseq
    %v194 = vshrl.u32 %v193, 7
    %v195 = vsub.s32 0, %v194
    %v196 = vrot.slane %v192, %v195
    %vm197 = vcmask 31744
    %v199 = vsel %vm197, %v190, 0
    %vm201 = vcmask 1041408
    %v203 = vsel %vm201, %v191, 0
    %205 = vmatprep.subr.bf16.mxu0 0
    %206 = vmatpush1.bf16.msra.mxu0 %v203
    %207 = vmatprep.subr.bf16.mxu0 0
    %208 = vmatpush1.bf16.msra.mxu0 0
    %209 = vmatprep.subr.bf16.mxu0 0
    %210 = vmatpush1.bf16.msra.mxu0 0
    %211 = vmatprep.subr.bf16.mxu0 0
    %212 = vmatpush1.bf16.msra.mxu0 0
    %213 = vmatprep.subr.bf16.mxu0 0
    %214 = vmatpush1.bf16.msra.mxu0 0
    %215 = vmatprep.subr.bf16.mxu0 0
    %216 = vmatpush1.bf16.msra.mxu0 0
    %217 = vmatprep.subr.bf16.mxu0 0
    %218 = vmatpush1.bf16.msra.mxu0 0
    %219 = vmatprep.subr.bf16.mxu0 0
    %220 = vmatpush1.bf16.msra.mxu0 0
    %221 = vmatprep.subr.bf16.mxu0 0
    %222 = vmatpush1.bf16.msra.mxu0 0
    %223 = vmatprep.subr.bf16.mxu0 0
    %224 = vmatpush1.bf16.msra.mxu0 0
    %225 = vmatprep.subr.bf16.mxu0 0
    %226 = vmatpush1.bf16.msra.mxu0 0
    %227 = vmatprep.subr.bf16.mxu0 0
    %228 = vmatpush1.bf16.msra.mxu0 0
    %229 = vmatprep.subr.bf16.mxu0 0
    %230 = vmatpush1.bf16.msra.mxu0 0
    %231 = vmatprep.subr.bf16.mxu0 0
    %232 = vmatpush1.bf16.msra.mxu0 0
    %233 = vmatprep.subr.bf16.mxu0 0
    %234 = vmatpush1.bf16.msra.mxu0 0
    %235 = vmatprep.subr.bf16.mxu0 0
    %236 = vmatpush1.bf16.msra.mxu0 0
    %237 = vmatprep.mubr.bf16.mxu0 0
    %238 = vmatmul.mubr.bf16.gmra.mrb[0].mxu0 %v199
    %v239 = vpop.f32.mrb[0].mxu0
    %v240 = vadd.f32 %v196, %v239
    %v241 = vpop.f32.mrb[0].mxu0
    %v242 = vpop.f32.mrb[0].mxu0
    %v243 = vadd.f32 %v196, %v242
    %v244 = vpop.f32.mrb[0].mxu0
    %245 = vdwg.mxu0
    %v246 = vsel %vm143, %v240, 0.0
    %v247 = vsel %vm143, %v243, 0.0
    %v248 = vadd.f32 %v246, %v247
    %v249 = vrot.slane %v248, 4
    %v250 = vadd.f32 %v248, %v249
    %v251 = vrot.slane %v250, 2
    %v252 = vadd.f32 %v250, %v251
    %v253 = vrot.slane %v252, 1
    %v254 = vadd.f32 %v252, %v253
    %v255 = vrcp.pop 16.0
    %v256 = vmul.f32 %v254, %v255
    %v257 = vmul.f32 %v240, %v240
    %v258 = vmul.f32 %v243, %v243
    %v259 = vsel %vm143, %v257, 0.0
    %v260 = vsel %vm143, %v258, 0.0
    %v261 = vadd.f32 %v259, %v260
    %v262 = vrot.slane %v261, 4
    %v263 = vadd.f32 %v261, %v262
    %v264 = vrot.slane %v263, 2
    %v265 = vadd.f32 %v263, %v264
    %v266 = vrot.slane %v265, 1
    %v267 = vadd.f32 %v265, %v266
    %v268 = vmul.f32 %v267, %v255
    %v269 = vmul.f32 %v256, %v256
    %v270 = vsub.f32 %v268, %v269
    %v271 = vmax.f32 %v270, 0.0
    %v272 = vsub.f32 %v240, %v256
    %v273 = vsub.f32 %v243, %v256
    %v274 = vadd.f32 %v271, 1e-05
    %v275 = vrsqrt.pop %v274
    %v276 = vmul.f32 %v272, %v275
    %v277 = vmul.f32 %v273, %v275
    %vm278 = vcmp.gt.f32.partialorder %v276, 0.0
    %vm279 = vcmp.gt.f32.partialorder %v277, 0.0
    %v280 = vmul.f32 %v276, 0.01
    %v281 = vmul.f32 %v277, 0.01
    %v282 = vsel %vm278, %v276, %v280
    %v283 = vsel %vm279, %v277, %v281
    %v284 = vpack.c.bf16 %v283, %v282
    %v285 = vld [vmem:[#allocation8] sm:$0xf]
    %v286 = vld [vmem:[#allocation8 + $0x4] sm:$0xf]
    %v287 = vld [vmem:[%s10 + $0x2] sm:$0x1]
    %v288 = vlaneseq
    %v289 = vshrl.u32 %v288, 7
    %v290 = vsub.s32 0, %v289
    %v291 = vrot.slane %v287, %v290
    %v294 = vunpack.c.l.b16 %v285
    %v295 = vunpack.c.l.b16 %v286
    %v296 = vpack.c.b16 %v295, %v294
    %v299 = vsel %vm143, %v284, 0
    %301 = vmatprep.subr.bf16.mxu0 0
    %302 = vmatpush1.bf16.msra.mxu0 %v296
    %303 = vmatprep.subr.bf16.mxu0 0
    %304 = vmatpush1.bf16.msra.mxu0 0
    %305 = vmatprep.subr.bf16.mxu0 0
    %306 = vmatpush1.bf16.msra.mxu0 0
    %307 = vmatprep.subr.bf16.mxu0 0
    %308 = vmatpush1.bf16.msra.mxu0 0
    %309 = vmatprep.subr.bf16.mxu0 0
    %310 = vmatpush1.bf16.msra.mxu0 0
    %311 = vmatprep.subr.bf16.mxu0 0
    %312 = vmatpush1.bf16.msra.mxu0 0
    %313 = vmatprep.subr.bf16.mxu0 0
    %314 = vmatpush1.bf16.msra.mxu0 0
    %315 = vmatprep.subr.bf16.mxu0 0
    %316 = vmatpush1.bf16.msra.mxu0 0
    %317 = vmatprep.subr.bf16.mxu0 0
    %318 = vmatpush1.bf16.msra.mxu0 0
    %319 = vmatprep.subr.bf16.mxu0 0
    %320 = vmatpush1.bf16.msra.mxu0 0
    %321 = vmatprep.subr.bf16.mxu0 0
    %322 = vmatpush1.bf16.msra.mxu0 0
    %323 = vmatprep.subr.bf16.mxu0 0
    %324 = vmatpush1.bf16.msra.mxu0 0
    %325 = vmatprep.subr.bf16.mxu0 0
    %326 = vmatpush1.bf16.msra.mxu0 0
    %327 = vmatprep.subr.bf16.mxu0 0
    %328 = vmatpush1.bf16.msra.mxu0 0
    %329 = vmatprep.subr.bf16.mxu0 0
    %330 = vmatpush1.bf16.msra.mxu0 0
    %331 = vmatprep.subr.bf16.mxu0 0
    %332 = vmatpush1.bf16.msra.mxu0 0
    %333 = vmatprep.mubr.bf16.mxu0 0
    %334 = vmatmul.mubr.bf16.gmra.mrb[0].mxu0 %v299
    %v335 = vpop.f32.mrb[0].mxu0
    %v336 = vadd.f32 %v291, %v335
    %v337 = vpop.f32.mrb[0].mxu0
    %v338 = vpop.f32.mrb[0].mxu0
    %v339 = vadd.f32 %v291, %v338
    %v340 = vpop.f32.mrb[0].mxu0
    %341 = vdwg.mxu0
    %vm342 = vcmask 261120
    %v343 = vsel %vm342, %v336, 0.0
    %v344 = vsel %vm342, %v339, 0.0
    %v345 = vadd.f32 %v343, %v344
    %v346 = vrot.slane %v345, 4
    %v347 = vadd.f32 %v345, %v346
    %v348 = vrot.slane %v347, 2
    %v349 = vadd.f32 %v347, %v348
    %v350 = vrot.slane %v349, 1
    %v351 = vadd.f32 %v349, %v350
    %v352 = vmul.f32 %v351, %v255
    %v353 = vmul.f32 %v336, %v336
    %v354 = vmul.f32 %v339, %v339
    %v355 = vsel %vm342, %v353, 0.0
    %v356 = vsel %vm342, %v354, 0.0
    %v357 = vadd.f32 %v355, %v356
    %v358 = vrot.slane %v357, 4
    %v359 = vadd.f32 %v357, %v358
    %v360 = vrot.slane %v359, 2
    %v361 = vadd.f32 %v359, %v360
    %v362 = vrot.slane %v361, 1
    %v363 = vadd.f32 %v361, %v362
    %v364 = vmul.f32 %v363, %v255
    %v365 = vmul.f32 %v352, %v352
    %v366 = vsub.f32 %v364, %v365
    %v367 = vmax.f32 %v366, 0.0
    %v368 = vsub.f32 %v336, %v352
    %v369 = vsub.f32 %v339, %v352
    %v370 = vadd.f32 %v367, 1e-05
    %v371 = vrsqrt.pop %v370
    %v372 = vmul.f32 %v368, %v371
    %v373 = vmul.f32 %v369, %v371
    %vm374 = vcmp.gt.f32.partialorder %v372, 0.0
    %vm375 = vcmp.gt.f32.partialorder %v373, 0.0
    %v376 = vmul.f32 %v372, 0.01
    %v377 = vmul.f32 %v373, 0.01
    %v378 = vsel %vm374, %v372, %v376
    %v379 = vsel %vm375, %v373, %v377
    %v380 = vpack.c.bf16 %v379, %v378
    %v381 = vld [vmem:[#allocation9] sm:$0xf]
    %v382 = vld [vmem:[#allocation9 + $0x4] sm:$0xf]
    %v383 = vld [vmem:[#allocation9 + $0x8] sm:$0xf]
    %v384 = vld [vmem:[#allocation9 + $0xc] sm:$0xf]
    %v385 = vld [vmem:[%s10 + $0x3] sm:$0x1]
    %v386 = vlaneseq
    %v387 = vshrl.u32 %v386, 7
    %v388 = vsub.s32 0, %v387
    %v389 = vrot.slane %v385, %v388
    %v394 = vunpack.c.l.b16 %v381
    %v395 = vunpack.c.l.b16 %v382
    %v396 = vunpack.c.l.b16 %v383
    %v397 = vunpack.c.l.b16 %v384
    %v398 = vpack.c.b16 %v395, %v394
    %v399 = vpack.c.b16 %v397, %v396
    %v403 = vsel %vm342, %v380, 0
    %405 = vmatprep.subr.bf16.mxu0 0
    %406 = vmatpush1.bf16.msra.mxu0 %v398
    %407 = vmatprep.subr.bf16.mxu0 0
    %408 = vmatpush1.bf16.msra.mxu0 %v399
    %409 = vmatprep.subr.bf16.mxu0 0
    %410 = vmatpush1.bf16.msra.mxu0 0
    %411 = vmatprep.subr.bf16.mxu0 0
    %412 = vmatpush1.bf16.msra.mxu0 0
    %413 = vmatprep.subr.bf16.mxu0 0
    %414 = vmatpush1.bf16.msra.mxu0 0
    %415 = vmatprep.subr.bf16.mxu0 0
    %416 = vmatpush1.bf16.msra.mxu0 0
    %417 = vmatprep.subr.bf16.mxu0 0
    %418 = vmatpush1.bf16.msra.mxu0 0
    %419 = vmatprep.subr.bf16.mxu0 0
    %420 = vmatpush1.bf16.msra.mxu0 0
    %421 = vmatprep.subr.bf16.mxu0 0
    %422 = vmatpush1.bf16.msra.mxu0 0
    %423 = vmatprep.subr.bf16.mxu0 0
    %424 = vmatpush1.bf16.msra.mxu0 0
    %425 = vmatprep.subr.bf16.mxu0 0
    %426 = vmatpush1.bf16.msra.mxu0 0
    %427 = vmatprep.subr.bf16.mxu0 0
    %428 = vmatpush1.bf16.msra.mxu0 0
    %429 = vmatprep.subr.bf16.mxu0 0
    %430 = vmatpush1.bf16.msra.mxu0 0
    %431 = vmatprep.subr.bf16.mxu0 0
    %432 = vmatpush1.bf16.msra.mxu0 0
    %433 = vmatprep.subr.bf16.mxu0 0
    %434 = vmatpush1.bf16.msra.mxu0 0
    %435 = vmatprep.subr.bf16.mxu0 0
    %436 = vmatpush1.bf16.msra.mxu0 0
    %437 = vmatprep.mubr.bf16.mxu0 0
    %438 = vmatmul.mubr.bf16.gmra.mrb[0].mxu0 %v403
    %v439 = vpop.f32.mrb[0].mxu0
    %v440 = vadd.f32 %v389, %v439
    %v441 = vpop.f32.mrb[0].mxu0
    %v442 = vpop.f32.mrb[0].mxu0
    %v443 = vadd.f32 %v389, %v442
    %v444 = vpop.f32.mrb[0].mxu0
    %445 = vdwg.mxu0
    %vm446 = vcmask 523264
    %v447 = vsel %vm446, %v440, 0.0
    %v448 = vsel %vm446, %v443, 0.0
    %v449 = vadd.f32 %v447, %v448
    %v450 = vrot.slane %v449, 4
    %v451 = vadd.f32 %v449, %v450
    %v452 = vrot.slane %v451, 2
    %v453 = vadd.f32 %v451, %v452
    %v454 = vrot.slane %v453, 1
    %v455 = vadd.f32 %v453, %v454
    %v456 = vmul.f32 %v455, %v255
    %v457 = vmul.f32 %v440, %v440
    %v458 = vmul.f32 %v443, %v443
    %v459 = vsel %vm446, %v457, 0.0
    %v460 = vsel %vm446, %v458, 0.0
    %v461 = vadd.f32 %v459, %v460
    %v462 = vrot.slane %v461, 4
    %v463 = vadd.f32 %v461, %v462
    %v464 = vrot.slane %v463, 2
    %v465 = vadd.f32 %v463, %v464
    %v466 = vrot.slane %v465, 1
    %v467 = vadd.f32 %v465, %v466
    %v468 = vmul.f32 %v467, %v255
    %v469 = vmul.f32 %v456, %v456
    %v470 = vsub.f32 %v468, %v469
    %v471 = vmax.f32 %v470, 0.0
    %v472 = vsub.f32 %v440, %v456
    %v473 = vsub.f32 %v443, %v456
    %v474 = vadd.f32 %v471, 1e-05
    %v475 = vrsqrt.pop %v474
    %v476 = vmul.f32 %v472, %v475
    %v477 = vmul.f32 %v473, %v475
    %vm478 = vcmp.gt.f32.partialorder %v476, 0.0
    %vm479 = vcmp.gt.f32.partialorder %v477, 0.0
    %v480 = vmul.f32 %v476, 0.01
    %v481 = vmul.f32 %v477, 0.01
    %v482 = vsel %vm478, %v476, %v480
    %v483 = vsel %vm479, %v477, %v481
    %v484 = vpack.c.bf16 %v483, %v482
    %v485 = vld [vmem:[%s5] sm:$0xf]
    %v486 = vld [vmem:[%s5 + $0x4] sm:$0xf]
    %v487 = vld [vmem:[%s5 + $0x8] sm:$0xf]
    %v488 = vld [vmem:[%s5 + $0xc] sm:$0xf]
    %v489 = vld [vmem:[%s5 + $0x10] sm:$0xf]
    %v490 = vld [vmem:[%s5 + $0x14] sm:$0xf]
    %v491 = vld [vmem:[%s5 + $0x18] sm:$0xf]
    %v492 = vld [vmem:[%s5 + $0x1c] sm:$0xf]
    %v493 = vld [vmem:[%s10 + $0x4] sm:$0x1]
    %v494 = vlaneseq
    %v495 = vshrl.u32 %v494, 7
    %v496 = vsub.s32 0, %v495
    %v497 = vrot.slane %v493, %v496
    %v506 = vunpack.c.l.b16 %v485
    %v507 = vunpack.c.l.b16 %v486
    %v508 = vunpack.c.l.b16 %v487
    %v509 = vunpack.c.l.b16 %v488
    %v510 = vunpack.c.l.b16 %v489
    %v511 = vunpack.c.l.b16 %v490
    %v512 = vunpack.c.l.b16 %v491
    %v513 = vunpack.c.l.b16 %v492
    %v514 = vpack.c.b16 %v507, %v506
    %v515 = vpack.c.b16 %v509, %v508
    %v516 = vpack.c.b16 %v511, %v510
    %v517 = vpack.c.b16 %v513, %v512
    %v523 = vsel %vm446, %v484, 0
    %525 = vmatprep.subr.bf16.mxu0 0
    %526 = vmatpush1.bf16.msra.mxu0 %v514
    %527 = vmatprep.subr.bf16.mxu0 0
    %528 = vmatpush1.bf16.msra.mxu0 %v515
    %529 = vmatprep.subr.bf16.mxu0 0
    %530 = vmatpush1.bf16.msra.mxu0 %v516
    %531 = vmatprep.subr.bf16.mxu0 0
    %532 = vmatpush1.bf16.msra.mxu0 %v517
    %533 = vmatprep.subr.bf16.mxu0 0
    %534 = vmatpush1.bf16.msra.mxu0 0
    %535 = vmatprep.subr.bf16.mxu0 0
    %536 = vmatpush1.bf16.msra.mxu0 0
    %537 = vmatprep.subr.bf16.mxu0 0
    %538 = vmatpush1.bf16.msra.mxu0 0
    %539 = vmatprep.subr.bf16.mxu0 0
    %540 = vmatpush1.bf16.msra.mxu0 0
    %541 = vmatprep.subr.bf16.mxu0 0
    %542 = vmatpush1.bf16.msra.mxu0 0
    %543 = vmatprep.subr.bf16.mxu0 0
    %544 = vmatpush1.bf16.msra.mxu0 0
    %545 = vmatprep.subr.bf16.mxu0 0
    %546 = vmatpush1.bf16.msra.mxu0 0
    %547 = vmatprep.subr.bf16.mxu0 0
    %548 = vmatpush1.bf16.msra.mxu0 0
    %549 = vmatprep.subr.bf16.mxu0 0
    %550 = vmatpush1.bf16.msra.mxu0 0
    %551 = vmatprep.subr.bf16.mxu0 0
    %552 = vmatpush1.bf16.msra.mxu0 0
    %553 = vmatprep.subr.bf16.mxu0 0
    %554 = vmatpush1.bf16.msra.mxu0 0
    %555 = vmatprep.subr.bf16.mxu0 0
    %556 = vmatpush1.bf16.msra.mxu0 0
    %557 = vmatprep.mubr.bf16.mxu0 0
    %558 = vmatmul.mubr.bf16.gmra.mrb[0].mxu0 %v523
    %v559 = vpop.f32.mrb[0].mxu0
    %v560 = vadd.f32 %v497, %v559
    %v561 = vpop.f32.mrb[0].mxu0
    %v562 = vpop.f32.mrb[0].mxu0
    %v563 = vadd.f32 %v497, %v562
    %v564 = vpop.f32.mrb[0].mxu0
    %565 = vdwg.mxu0
    %v566 = vsel %vm446, %v560, 0.0
    %v567 = vsel %vm446, %v563, 0.0
    %v568 = vadd.f32 %v566, %v567
    %v569 = vrot.slane %v568, 4
    %v570 = vadd.f32 %v568, %v569
    %v571 = vrot.slane %v570, 2
    %v572 = vadd.f32 %v570, %v571
    %v573 = vrot.slane %v572, 1
    %v574 = vadd.f32 %v572, %v573
    %v575 = vmul.f32 %v574, %v255
    %v576 = vmul.f32 %v560, %v560
    %v577 = vmul.f32 %v563, %v563
    %v578 = vsel %vm446, %v576, 0.0
    %v579 = vsel %vm446, %v577, 0.0
    %v580 = vadd.f32 %v578, %v579
    %v581 = vrot.slane %v580, 4
    %v582 = vadd.f32 %v580, %v581
    %v583 = vrot.slane %v582, 2
    %v584 = vadd.f32 %v582, %v583
    %v585 = vrot.slane %v584, 1
    %v586 = vadd.f32 %v584, %v585
    %v587 = vmul.f32 %v586, %v255
    %v588 = vmul.f32 %v575, %v575
    %v589 = vsub.f32 %v587, %v588
    %v590 = vmax.f32 %v589, 0.0
    %v591 = vsub.f32 %v560, %v575
    %v592 = vsub.f32 %v563, %v575
    %v593 = vadd.f32 %v590, 1e-05
    %v594 = vrsqrt.pop %v593
    %v595 = vmul.f32 %v591, %v594
    %v596 = vmul.f32 %v592, %v594
    %vm597 = vcmp.gt.f32.partialorder %v595, 0.0
    %vm598 = vcmp.gt.f32.partialorder %v596, 0.0
    %v599 = vmul.f32 %v595, 0.01
    %v600 = vmul.f32 %v596, 0.01
    %v601 = vsel %vm597, %v595, %v599
    %v602 = vsel %vm598, %v596, %v600
    %v603 = vpack.c.bf16 %v602, %v601
    %v604 = vld [vmem:[%s6] sm:$0xf]
    %v605 = vld [vmem:[%s6 + $0x4] sm:$0xf]
    %v606 = vld [vmem:[%s6 + $0x8] sm:$0xf]
    %v607 = vld [vmem:[%s6 + $0xc] sm:$0xf]
    %v608 = vld [vmem:[%s6 + $0x10] sm:$0xf]
    %v609 = vld [vmem:[%s6 + $0x14] sm:$0xf]
    %v610 = vld [vmem:[%s6 + $0x18] sm:$0xf]
    %v611 = vld [vmem:[%s6 + $0x1c] sm:$0xf]
    %v612 = vld [vmem:[%s10 + $0x5] sm:$0x1]
    %v613 = vlaneseq
    %v614 = vshrl.u32 %v613, 7
    %v615 = vsub.s32 0, %v614
    %v616 = vrot.slane %v612, %v615
    %v625 = vunpack.c.l.b16 %v604
    %v626 = vunpack.c.l.b16 %v605
    %v627 = vunpack.c.l.b16 %v606
    %v628 = vunpack.c.l.b16 %v607
    %v629 = vunpack.c.l.b16 %v608
    %v630 = vunpack.c.l.b16 %v609
    %v631 = vunpack.c.l.b16 %v610
    %v632 = vunpack.c.l.b16 %v611
    %v633 = vpack.c.b16 %v626, %v625
    %v634 = vpack.c.b16 %v628, %v627
    %v635 = vpack.c.b16 %v630, %v629
    %v636 = vpack.c.b16 %v632, %v631
    %v642 = vsel %vm446, %v603, 0
    %644 = vmatprep.subr.bf16.mxu0 0
    %645 = vmatpush1.bf16.msra.mxu0 %v633
    %646 = vmatprep.subr.bf16.mxu0 0
    %647 = vmatpush1.bf16.msra.mxu0 %v634
    %648 = vmatprep.subr.bf16.mxu0 0
    %649 = vmatpush1.bf16.msra.mxu0 %v635
    %650 = vmatprep.subr.bf16.mxu0 0
    %651 = vmatpush1.bf16.msra.mxu0 %v636
    %652 = vmatprep.subr.bf16.mxu0 0
    %653 = vmatpush1.bf16.msra.mxu0 0
    %654 = vmatprep.subr.bf16.mxu0 0
    %655 = vmatpush1.bf16.msra.mxu0 0
    %656 = vmatprep.subr.bf16.mxu0 0
    %657 = vmatpush1.bf16.msra.mxu0 0
    %658 = vmatprep.subr.bf16.mxu0 0
    %659 = vmatpush1.bf16.msra.mxu0 0
    %660 = vmatprep.subr.bf16.mxu0 0
    %661 = vmatpush1.bf16.msra.mxu0 0
    %662 = vmatprep.subr.bf16.mxu0 0
    %663 = vmatpush1.bf16.msra.mxu0 0
    %664 = vmatprep.subr.bf16.mxu0 0
    %665 = vmatpush1.bf16.msra.mxu0 0
    %666 = vmatprep.subr.bf16.mxu0 0
    %667 = vmatpush1.bf16.msra.mxu0 0
    %668 = vmatprep.subr.bf16.mxu0 0
    %669 = vmatpush1.bf16.msra.mxu0 0
    %670 = vmatprep.subr.bf16.mxu0 0
    %671 = vmatpush1.bf16.msra.mxu0 0
    %672 = vmatprep.subr.bf16.mxu0 0
    %673 = vmatpush1.bf16.msra.mxu0 0
    %674 = vmatprep.subr.bf16.mxu0 0
    %675 = vmatpush1.bf16.msra.mxu0 0
    %676 = vmatprep.mubr.bf16.mxu0 0
    %677 = vmatmul.mubr.bf16.gmra.mrb[0].mxu0 %v642
    %v678 = vpop.f32.mrb[0].mxu0
    %v679 = vadd.f32 %v616, %v678
    %v680 = vpop.f32.mrb[0].mxu0
    %v681 = vpop.f32.mrb[0].mxu0
    %v682 = vadd.f32 %v616, %v681
    %v683 = vpop.f32.mrb[0].mxu0
    %684 = vdwg.mxu0
    %v685 = vsel %vm342, %v679, 0.0
    %v686 = vsel %vm342, %v682, 0.0
    %v687 = vadd.f32 %v685, %v686
    %v688 = vrot.slane %v687, 4
    %v689 = vadd.f32 %v687, %v688
    %v690 = vrot.slane %v689, 2
    %v691 = vadd.f32 %v689, %v690
    %v692 = vrot.slane %v691, 1
    %v693 = vadd.f32 %v691, %v692
    %v694 = vmul.f32 %v693, %v255
    %v695 = vmul.f32 %v679, %v679
    %v696 = vmul.f32 %v682, %v682
    %v697 = vsel %vm342, %v695, 0.0
    %v698 = vsel %vm342, %v696, 0.0
    %v699 = vadd.f32 %v697, %v698
    %v700 = vrot.slane %v699, 4
    %v701 = vadd.f32 %v699, %v700
    %v702 = vrot.slane %v701, 2
    %v703 = vadd.f32 %v701, %v702
    %v704 = vrot.slane %v703, 1
    %v705 = vadd.f32 %v703, %v704
    %v706 = vmul.f32 %v705, %v255
    %v707 = vmul.f32 %v694, %v694
    %v708 = vsub.f32 %v706, %v707
    %v709 = vmax.f32 %v708, 0.0
    %v710 = vsub.f32 %v679, %v694
    %v711 = vsub.f32 %v682, %v694
    %v712 = vadd.f32 %v709, 1e-05
    %v713 = vrsqrt.pop %v712
    %v714 = vmul.f32 %v710, %v713
    %v715 = vmul.f32 %v711, %v713
    %vm716 = vcmp.gt.f32.partialorder %v714, 0.0
    %vm717 = vcmp.gt.f32.partialorder %v715, 0.0
    %v718 = vmul.f32 %v714, 0.01
    %v719 = vmul.f32 %v715, 0.01
    %v720 = vsel %vm716, %v714, %v718
    %v721 = vsel %vm717, %v715, %v719
    %722 = vst.msk [vmem:[#allocation2] sm:$0xff] %vm342, %v720
    %723 = vst.msk [vmem:[#allocation2 + $0x8] sm:$0xff] %vm342, %v721
    %v724 = vld [vmem:[#allocation2] sm:$0x3]
    %v725 = vpack.c.bf16 %v724, %v724
    %v726 = vld [vmem:[#allocation11] sm:$0xf]
    %v727 = vld [vmem:[#allocation11 + $0x4] sm:$0xf]
    %v728 = vld [vmem:[#allocation11 + $0x8] sm:$0xf]
    %v729 = vld [vmem:[#allocation11 + $0xc] sm:$0xf]
    %v730 = vld [vmem:[#allocation2 + $0x2] sm:$0x3]
    %v731 = vpack.c.bf16 %v730, %v730
    %s732 = scalar_lea.vmem [#allocation11], 16
    %v733 = vld [vmem:[%s732] sm:$0xf]
    %v734 = vld [vmem:[%s732 + $0x4] sm:$0xf]
    %v735 = vld [vmem:[%s732 + $0x8] sm:$0xf]
    %v736 = vld [vmem:[%s732 + $0xc] sm:$0xf]
    %v741 = vunpack.c.l.b16 %v733
    %v742 = vunpack.c.l.b16 %v734
    %v743 = vunpack.c.l.b16 %v735
    %v744 = vunpack.c.l.b16 %v736
    %v745 = vpack.c.b16 %v742, %v741
    %v746 = vpack.c.b16 %v744, %v743
    %v750 = vsel %vm342, %v731, 0
    %752 = vmatprep.subr.bf16.mxu0 0
    %753 = vmatpush1.bf16.msra.mxu0 %v745
    %754 = vmatprep.subr.bf16.mxu0 0
    %755 = vmatpush1.bf16.msra.mxu0 %v746
    %756 = vmatprep.subr.bf16.mxu0 0
    %757 = vmatpush1.bf16.msra.mxu0 0
    %758 = vmatprep.subr.bf16.mxu0 0
    %759 = vmatpush1.bf16.msra.mxu0 0
    %760 = vmatprep.subr.bf16.mxu0 0
    %761 = vmatpush1.bf16.msra.mxu0 0
    %762 = vmatprep.subr.bf16.mxu0 0
    %763 = vmatpush1.bf16.msra.mxu0 0
    %764 = vmatprep.subr.bf16.mxu0 0
    %765 = vmatpush1.bf16.msra.mxu0 0
    %766 = vmatprep.subr.bf16.mxu0 0
    %767 = vmatpush1.bf16.msra.mxu0 0
    %768 = vmatprep.subr.bf16.mxu0 0
    %769 = vmatpush1.bf16.msra.mxu0 0
    %770 = vmatprep.subr.bf16.mxu0 0
    %771 = vmatpush1.bf16.msra.mxu0 0
    %772 = vmatprep.subr.bf16.mxu0 0
    %773 = vmatpush1.bf16.msra.mxu0 0
    %774 = vmatprep.subr.bf16.mxu0 0
    %775 = vmatpush1.bf16.msra.mxu0 0
    %776 = vmatprep.subr.bf16.mxu0 0
    %777 = vmatpush1.bf16.msra.mxu0 0
    %778 = vmatprep.subr.bf16.mxu0 0
    %779 = vmatpush1.bf16.msra.mxu0 0
    %780 = vmatprep.subr.bf16.mxu0 0
    %781 = vmatpush1.bf16.msra.mxu0 0
    %782 = vmatprep.subr.bf16.mxu0 0
    %783 = vmatpush1.bf16.msra.mxu0 0
    %784 = vmatprep.mubr.bf16.mxu0 0
    %785 = vmatmul.mubr.bf16.gmra.mrb[0].mxu0 %v750
    %v786 = vpop.f32.mrb[0].mxu0
    %v787 = vadd.f32 0.0, %v786
    %v788 = vpop.f32.mrb[0].mxu0
    %v789 = vpop.f32.mrb[0].mxu0
    %v790 = vpop.f32.mrb[0].mxu0
    %791 = vdwg.mxu0
    %v796 = vunpack.c.l.b16 %v726
    %v797 = vunpack.c.l.b16 %v727
    %v798 = vunpack.c.l.b16 %v728
    %v799 = vunpack.c.l.b16 %v729
    %v800 = vpack.c.b16 %v797, %v796
    %v801 = vpack.c.b16 %v799, %v798
    %v805 = vsel %vm342, %v725, 0
    %807 = vmatprep.subr.bf16.mxu0 0
    %808 = vmatpush1.bf16.msra.mxu0 %v800
    %809 = vmatprep.subr.bf16.mxu0 0
    %810 = vmatpush1.bf16.msra.mxu0 %v801
    %811 = vmatprep.subr.bf16.mxu0 0
    %812 = vmatpush1.bf16.msra.mxu0 0
    %813 = vmatprep.subr.bf16.mxu0 0
    %814 = vmatpush1.bf16.msra.mxu0 0
    %815 = vmatprep.subr.bf16.mxu0 0
    %816 = vmatpush1.bf16.msra.mxu0 0
    %817 = vmatprep.subr.bf16.mxu0 0
    %818 = vmatpush1.bf16.msra.mxu0 0
    %819 = vmatprep.subr.bf16.mxu0 0
    %820 = vmatpush1.bf16.msra.mxu0 0
    %821 = vmatprep.subr.bf16.mxu0 0
    %822 = vmatpush1.bf16.msra.mxu0 0
    %823 = vmatprep.subr.bf16.mxu0 0
    %824 = vmatpush1.bf16.msra.mxu0 0
    %825 = vmatprep.subr.bf16.mxu0 0
    %826 = vmatpush1.bf16.msra.mxu0 0
    %827 = vmatprep.subr.bf16.mxu0 0
    %828 = vmatpush1.bf16.msra.mxu0 0
    %829 = vmatprep.subr.bf16.mxu0 0
    %830 = vmatpush1.bf16.msra.mxu0 0
    %831 = vmatprep.subr.bf16.mxu0 0
    %832 = vmatpush1.bf16.msra.mxu0 0
    %833 = vmatprep.subr.bf16.mxu0 0
    %834 = vmatpush1.bf16.msra.mxu0 0
    %835 = vmatprep.subr.bf16.mxu0 0
    %836 = vmatpush1.bf16.msra.mxu0 0
    %837 = vmatprep.subr.bf16.mxu0 0
    %838 = vmatpush1.bf16.msra.mxu0 0
    %839 = vmatprep.mubr.bf16.mxu0 0
    %840 = vmatmul.mubr.bf16.gmra.mrb[0].mxu0 %v805
    %v841 = vpop.f32.mrb[0].mxu0
    %v842 = vadd.f32 %v787, %v841
    %v843 = vpop.f32.mrb[0].mxu0
    %v844 = vpop.f32.mrb[0].mxu0
    %v845 = vpop.f32.mrb[0].mxu0
    %846 = vdwg.mxu0
    %v847 = vld [vmem:[#allocation2 + $0x4] sm:$0x3]
    %v848 = vpack.c.bf16 %v847, %v847
    %s849 = scalar_lea.vmem [#allocation11], 32
    %v850 = vld [vmem:[%s849] sm:$0xf]
    %v851 = vld [vmem:[%s849 + $0x4] sm:$0xf]
    %v852 = vld [vmem:[%s849 + $0x8] sm:$0xf]
    %v853 = vld [vmem:[%s849 + $0xc] sm:$0xf]
    %v858 = vunpack.c.l.b16 %v850
    %v859 = vunpack.c.l.b16 %v851
    %v860 = vunpack.c.l.b16 %v852
    %v861 = vunpack.c.l.b16 %v853
    %v862 = vpack.c.b16 %v859, %v858
    %v863 = vpack.c.b16 %v861, %v860
    %v867 = vsel %vm342, %v848, 0
    %869 = vmatprep.subr.bf16.mxu0 0
    %870 = vmatpush1.bf16.msra.mxu0 %v862
    %871 = vmatprep.subr.bf16.mxu0 0
    %872 = vmatpush1.bf16.msra.mxu0 %v863
    %873 = vmatprep.subr.bf16.mxu0 0
    %874 = vmatpush1.bf16.msra.mxu0 0
    %875 = vmatprep.subr.bf16.mxu0 0
    %876 = vmatpush1.bf16.msra.mxu0 0
    %877 = vmatprep.subr.bf16.mxu0 0
    %878 = vmatpush1.bf16.msra.mxu0 0
    %879 = vmatprep.subr.bf16.mxu0 0
    %880 = vmatpush1.bf16.msra.mxu0 0
    %881 = vmatprep.subr.bf16.mxu0 0
    %882 = vmatpush1.bf16.msra.mxu0 0
    %883 = vmatprep.subr.bf16.mxu0 0
    %884 = vmatpush1.bf16.msra.mxu0 0
    %885 = vmatprep.subr.bf16.mxu0 0
    %886 = vmatpush1.bf16.msra.mxu0 0
    %887 = vmatprep.subr.bf16.mxu0 0
    %888 = vmatpush1.bf16.msra.mxu0 0
    %889 = vmatprep.subr.bf16.mxu0 0
    %890 = vmatpush1.bf16.msra.mxu0 0
    %891 = vmatprep.subr.bf16.mxu0 0
    %892 = vmatpush1.bf16.msra.mxu0 0
    %893 = vmatprep.subr.bf16.mxu0 0
    %894 = vmatpush1.bf16.msra.mxu0 0
    %895 = vmatprep.subr.bf16.mxu0 0
    %896 = vmatpush1.bf16.msra.mxu0 0
    %897 = vmatprep.subr.bf16.mxu0 0
    %898 = vmatpush1.bf16.msra.mxu0 0
    %899 = vmatprep.subr.bf16.mxu0 0
    %900 = vmatpush1.bf16.msra.mxu0 0
    %901 = vmatprep.mubr.bf16.mxu0 0
    %902 = vmatmul.mubr.bf16.gmra.mrb[0].mxu0 %v867
    %v903 = vpop.f32.mrb[0].mxu0
    %v904 = vadd.f32 0.0, %v903
    %v905 = vpop.f32.mrb[0].mxu0
    %v906 = vpop.f32.mrb[0].mxu0
    %v907 = vpop.f32.mrb[0].mxu0
    %908 = vdwg.mxu0
    %v909 = vadd.f32 %v842, %v904
    %v910 = vld [vmem:[#allocation2 + $0x6] sm:$0x3]
    %v911 = vpack.c.bf16 %v910, %v910
    %s912 = scalar_lea.vmem [#allocation11], 48
    %v913 = vld [vmem:[%s912] sm:$0xf]
    %v914 = vld [vmem:[%s912 + $0x4] sm:$0xf]
    %v915 = vld [vmem:[%s912 + $0x8] sm:$0xf]
    %v916 = vld [vmem:[%s912 + $0xc] sm:$0xf]
    %v921 = vunpack.c.l.b16 %v913
    %v922 = vunpack.c.l.b16 %v914
    %v923 = vunpack.c.l.b16 %v915
    %v924 = vunpack.c.l.b16 %v916
    %v925 = vpack.c.b16 %v922, %v921
    %v926 = vpack.c.b16 %v924, %v923
    %v930 = vsel %vm342, %v911, 0
    %932 = vmatprep.subr.bf16.mxu0 0
    %933 = vmatpush1.bf16.msra.mxu0 %v925
    %934 = vmatprep.subr.bf16.mxu0 0
    %935 = vmatpush1.bf16.msra.mxu0 %v926
    %936 = vmatprep.subr.bf16.mxu0 0
    %937 = vmatpush1.bf16.msra.mxu0 0
    %938 = vmatprep.subr.bf16.mxu0 0
    %939 = vmatpush1.bf16.msra.mxu0 0
    %940 = vmatprep.subr.bf16.mxu0 0
    %941 = vmatpush1.bf16.msra.mxu0 0
    %942 = vmatprep.subr.bf16.mxu0 0
    %943 = vmatpush1.bf16.msra.mxu0 0
    %944 = vmatprep.subr.bf16.mxu0 0
    %945 = vmatpush1.bf16.msra.mxu0 0
    %946 = vmatprep.subr.bf16.mxu0 0
    %947 = vmatpush1.bf16.msra.mxu0 0
    %948 = vmatprep.subr.bf16.mxu0 0
    %949 = vmatpush1.bf16.msra.mxu0 0
    %950 = vmatprep.subr.bf16.mxu0 0
    %951 = vmatpush1.bf16.msra.mxu0 0
    %952 = vmatprep.subr.bf16.mxu0 0
    %953 = vmatpush1.bf16.msra.mxu0 0
    %954 = vmatprep.subr.bf16.mxu0 0
    %955 = vmatpush1.bf16.msra.mxu0 0
    %956 = vmatprep.subr.bf16.mxu0 0
    %957 = vmatpush1.bf16.msra.mxu0 0
    %958 = vmatprep.subr.bf16.mxu0 0
    %959 = vmatpush1.bf16.msra.mxu0 0
    %960 = vmatprep.subr.bf16.mxu0 0
    %961 = vmatpush1.bf16.msra.mxu0 0
    %962 = vmatprep.subr.bf16.mxu0 0
    %963 = vmatpush1.bf16.msra.mxu0 0
    %964 = vmatprep.mubr.bf16.mxu0 0
    %965 = vmatmul.mubr.bf16.gmra.mrb[0].mxu0 %v930
    %v966 = vpop.f32.mrb[0].mxu0
    %v967 = vadd.f32 0.0, %v966
    %v968 = vpop.f32.mrb[0].mxu0
    %v969 = vpop.f32.mrb[0].mxu0
    %v970 = vpop.f32.mrb[0].mxu0
    %971 = vdwg.mxu0
    %v972 = vadd.f32 %v909, %v967
    %v973 = vld [vmem:[#allocation2 + $0x8] sm:$0x3]
    %v974 = vpack.c.bf16 %v973, %v973
    %s975 = scalar_lea.vmem [#allocation11], 64
    %v976 = vld [vmem:[%s975] sm:$0xf]
    %v977 = vld [vmem:[%s975 + $0x4] sm:$0xf]
    %v978 = vld [vmem:[%s975 + $0x8] sm:$0xf]
    %v979 = vld [vmem:[%s975 + $0xc] sm:$0xf]
    %v984 = vunpack.c.l.b16 %v976
    %v985 = vunpack.c.l.b16 %v977
    %v986 = vunpack.c.l.b16 %v978
    %v987 = vunpack.c.l.b16 %v979
    %v988 = vpack.c.b16 %v985, %v984
    %v989 = vpack.c.b16 %v987, %v986
    %v993 = vsel %vm342, %v974, 0
    %995 = vmatprep.subr.bf16.mxu0 0
    %996 = vmatpush1.bf16.msra.mxu0 %v988
    %997 = vmatprep.subr.bf16.mxu0 0
    %998 = vmatpush1.bf16.msra.mxu0 %v989
    %999 = vmatprep.subr.bf16.mxu0 0
    %1000 = vmatpush1.bf16.msra.mxu0 0
    %1001 = vmatprep.subr.bf16.mxu0 0
    %1002 = vmatpush1.bf16.msra.mxu0 0
    %1003 = vmatprep.subr.bf16.mxu0 0
    %1004 = vmatpush1.bf16.msra.mxu0 0
    %1005 = vmatprep.subr.bf16.mxu0 0
    %1006 = vmatpush1.bf16.msra.mxu0 0
    %1007 = vmatprep.subr.bf16.mxu0 0
    %1008 = vmatpush1.bf16.msra.mxu0 0
    %1009 = vmatprep.subr.bf16.mxu0 0
    %1010 = vmatpush1.bf16.msra.mxu0 0
    %1011 = vmatprep.subr.bf16.mxu0 0
    %1012 = vmatpush1.bf16.msra.mxu0 0
    %1013 = vmatprep.subr.bf16.mxu0 0
    %1014 = vmatpush1.bf16.msra.mxu0 0
    %1015 = vmatprep.subr.bf16.mxu0 0
    %1016 = vmatpush1.bf16.msra.mxu0 0
    %1017 = vmatprep.subr.bf16.mxu0 0
    %1018 = vmatpush1.bf16.msra.mxu0 0
    %1019 = vmatprep.subr.bf16.mxu0 0
    %1020 = vmatpush1.bf16.msra.mxu0 0
    %1021 = vmatprep.subr.bf16.mxu0 0
    %1022 = vmatpush1.bf16.msra.mxu0 0
    %1023 = vmatprep.subr.bf16.mxu0 0
    %1024 = vmatpush1.bf16.msra.mxu0 0
    %1025 = vmatprep.subr.bf16.mxu0 0
    %1026 = vmatpush1.bf16.msra.mxu0 0
    %1027 = vmatprep.mubr.bf16.mxu0 0
    %1028 = vmatmul.mubr.bf16.gmra.mrb[0].mxu0 %v993
    %v1029 = vpop.f32.mrb[0].mxu0
    %v1030 = vadd.f32 0.0, %v1029
    %v1031 = vpop.f32.mrb[0].mxu0
    %v1032 = vpop.f32.mrb[0].mxu0
    %v1033 = vpop.f32.mrb[0].mxu0
    %1034 = vdwg.mxu0
    %v1035 = vadd.f32 %v972, %v1030
    %v1036 = vld [vmem:[#allocation2 + $0xa] sm:$0x3]
    %v1037 = vpack.c.bf16 %v1036, %v1036
    %s1038 = scalar_lea.vmem [#allocation11], 80
    %v1039 = vld [vmem:[%s1038] sm:$0xf]
    %v1040 = vld [vmem:[%s1038 + $0x4] sm:$0xf]
    %v1041 = vld [vmem:[%s1038 + $0x8] sm:$0xf]
    %v1042 = vld [vmem:[%s1038 + $0xc] sm:$0xf]
    %v1047 = vunpack.c.l.b16 %v1039
    %v1048 = vunpack.c.l.b16 %v1040
    %v1049 = vunpack.c.l.b16 %v1041
    %v1050 = vunpack.c.l.b16 %v1042
    %v1051 = vpack.c.b16 %v1048, %v1047
    %v1052 = vpack.c.b16 %v1050, %v1049
    %v1056 = vsel %vm342, %v1037, 0
    %1058 = vmatprep.subr.bf16.mxu0 0
    %1059 = vmatpush1.bf16.msra.mxu0 %v1051
    %1060 = vmatprep.subr.bf16.mxu0 0
    %1061 = vmatpush1.bf16.msra.mxu0 %v1052
    %1062 = vmatprep.subr.bf16.mxu0 0
    %1063 = vmatpush1.bf16.msra.mxu0 0
    %1064 = vmatprep.subr.bf16.mxu0 0
    %1065 = vmatpush1.bf16.msra.mxu0 0
    %1066 = vmatprep.subr.bf16.mxu0 0
    %1067 = vmatpush1.bf16.msra.mxu0 0
    %1068 = vmatprep.subr.bf16.mxu0 0
    %1069 = vmatpush1.bf16.msra.mxu0 0
    %1070 = vmatprep.subr.bf16.mxu0 0
    %1071 = vmatpush1.bf16.msra.mxu0 0
    %1072 = vmatprep.subr.bf16.mxu0 0
    %1073 = vmatpush1.bf16.msra.mxu0 0
    %1074 = vmatprep.subr.bf16.mxu0 0
    %1075 = vmatpush1.bf16.msra.mxu0 0
    %1076 = vmatprep.subr.bf16.mxu0 0
    %1077 = vmatpush1.bf16.msra.mxu0 0
    %1078 = vmatprep.subr.bf16.mxu0 0
    %1079 = vmatpush1.bf16.msra.mxu0 0
    %1080 = vmatprep.subr.bf16.mxu0 0
    %1081 = vmatpush1.bf16.msra.mxu0 0
    %1082 = vmatprep.subr.bf16.mxu0 0
    %1083 = vmatpush1.bf16.msra.mxu0 0
    %1084 = vmatprep.subr.bf16.mxu0 0
    %1085 = vmatpush1.bf16.msra.mxu0 0
    %1086 = vmatprep.subr.bf16.mxu0 0
    %1087 = vmatpush1.bf16.msra.mxu0 0
    %1088 = vmatprep.subr.bf16.mxu0 0
    %1089 = vmatpush1.bf16.msra.mxu0 0
    %1090 = vmatprep.mubr.bf16.mxu0 0
    %1091 = vmatmul.mubr.bf16.gmra.mrb[0].mxu0 %v1056
    %v1092 = vpop.f32.mrb[0].mxu0
    %v1093 = vadd.f32 0.0, %v1092
    %v1094 = vpop.f32.mrb[0].mxu0
    %v1095 = vpop.f32.mrb[0].mxu0
    %v1096 = vpop.f32.mrb[0].mxu0
    %1097 = vdwg.mxu0
    %v1098 = vadd.f32 %v1035, %v1093
    %v1099 = vld [vmem:[#allocation2 + $0xc] sm:$0x3]
    %v1100 = vpack.c.bf16 %v1099, %v1099
    %s1101 = scalar_lea.vmem [#allocation11], 96
    %v1102 = vld [vmem:[%s1101] sm:$0xf]
    %v1103 = vld [vmem:[%s1101 + $0x4] sm:$0xf]
    %v1104 = vld [vmem:[%s1101 + $0x8] sm:$0xf]
    %v1105 = vld [vmem:[%s1101 + $0xc] sm:$0xf]
    %v1110 = vunpack.c.l.b16 %v1102
    %v1111 = vunpack.c.l.b16 %v1103
    %v1112 = vunpack.c.l.b16 %v1104
    %v1113 = vunpack.c.l.b16 %v1105
    %v1114 = vpack.c.b16 %v1111, %v1110
    %v1115 = vpack.c.b16 %v1113, %v1112
    %v1119 = vsel %vm342, %v1100, 0
    %1121 = vmatprep.subr.bf16.mxu0 0
    %1122 = vmatpush1.bf16.msra.mxu0 %v1114
    %1123 = vmatprep.subr.bf16.mxu0 0
    %1124 = vmatpush1.bf16.msra.mxu0 %v1115
    %1125 = vmatprep.subr.bf16.mxu0 0
    %1126 = vmatpush1.bf16.msra.mxu0 0
    %1127 = vmatprep.subr.bf16.mxu0 0
    %1128 = vmatpush1.bf16.msra.mxu0 0
    %1129 = vmatprep.subr.bf16.mxu0 0
    %1130 = vmatpush1.bf16.msra.mxu0 0
    %1131 = vmatprep.subr.bf16.mxu0 0
    %1132 = vmatpush1.bf16.msra.mxu0 0
    %1133 = vmatprep.subr.bf16.mxu0 0
    %1134 = vmatpush1.bf16.msra.mxu0 0
    %1135 = vmatprep.subr.bf16.mxu0 0
    %1136 = vmatpush1.bf16.msra.mxu0 0
    %1137 = vmatprep.subr.bf16.mxu0 0
    %1138 = vmatpush1.bf16.msra.mxu0 0
    %1139 = vmatprep.subr.bf16.mxu0 0
    %1140 = vmatpush1.bf16.msra.mxu0 0
    %1141 = vmatprep.subr.bf16.mxu0 0
    %1142 = vmatpush1.bf16.msra.mxu0 0
    %1143 = vmatprep.subr.bf16.mxu0 0
    %1144 = vmatpush1.bf16.msra.mxu0 0
    %1145 = vmatprep.subr.bf16.mxu0 0
    %1146 = vmatpush1.bf16.msra.mxu0 0
    %1147 = vmatprep.subr.bf16.mxu0 0
    %1148 = vmatpush1.bf16.msra.mxu0 0
    %1149 = vmatprep.subr.bf16.mxu0 0
    %1150 = vmatpush1.bf16.msra.mxu0 0
    %1151 = vmatprep.subr.bf16.mxu0 0
    %1152 = vmatpush1.bf16.msra.mxu0 0
    %1153 = vmatprep.mubr.bf16.mxu0 0
    %1154 = vmatmul.mubr.bf16.gmra.mrb[0].mxu0 %v1119
    %v1155 = vpop.f32.mrb[0].mxu0
    %v1156 = vadd.f32 0.0, %v1155
    %v1157 = vpop.f32.mrb[0].mxu0
    %v1158 = vpop.f32.mrb[0].mxu0
    %v1159 = vpop.f32.mrb[0].mxu0
    %1160 = vdwg.mxu0
    %v1161 = vadd.f32 %v1098, %v1156
    %v1162 = vld [vmem:[#allocation2 + $0xe] sm:$0x3]
    %v1163 = vpack.c.bf16 %v1162, %v1162
    %s1164 = scalar_lea.vmem [#allocation11], 112
    %v1165 = vld [vmem:[%s1164] sm:$0xf]
    %v1166 = vld [vmem:[%s1164 + $0x4] sm:$0xf]
    %v1167 = vld [vmem:[%s1164 + $0x8] sm:$0xf]
    %v1168 = vld [vmem:[%s1164 + $0xc] sm:$0xf]
    %v1173 = vunpack.c.l.b16 %v1165
    %v1174 = vunpack.c.l.b16 %v1166
    %v1175 = vunpack.c.l.b16 %v1167
    %v1176 = vunpack.c.l.b16 %v1168
    %v1177 = vpack.c.b16 %v1174, %v1173
    %v1178 = vpack.c.b16 %v1176, %v1175
    %v1182 = vsel %vm342, %v1163, 0
    %1184 = vmatprep.subr.bf16.mxu0 0
    %1185 = vmatpush1.bf16.msra.mxu0 %v1177
    %1186 = vmatprep.subr.bf16.mxu0 0
    %1187 = vmatpush1.bf16.msra.mxu0 %v1178
    %1188 = vmatprep.subr.bf16.mxu0 0
    %1189 = vmatpush1.bf16.msra.mxu0 0
    %1190 = vmatprep.subr.bf16.mxu0 0
    %1191 = vmatpush1.bf16.msra.mxu0 0
    %1192 = vmatprep.subr.bf16.mxu0 0
    %1193 = vmatpush1.bf16.msra.mxu0 0
    %1194 = vmatprep.subr.bf16.mxu0 0
    %1195 = vmatpush1.bf16.msra.mxu0 0
    %1196 = vmatprep.subr.bf16.mxu0 0
    %1197 = vmatpush1.bf16.msra.mxu0 0
    %1198 = vmatprep.subr.bf16.mxu0 0
    %1199 = vmatpush1.bf16.msra.mxu0 0
    %1200 = vmatprep.subr.bf16.mxu0 0
    %1201 = vmatpush1.bf16.msra.mxu0 0
    %1202 = vmatprep.subr.bf16.mxu0 0
    %1203 = vmatpush1.bf16.msra.mxu0 0
    %1204 = vmatprep.subr.bf16.mxu0 0
    %1205 = vmatpush1.bf16.msra.mxu0 0
    %1206 = vmatprep.subr.bf16.mxu0 0
    %1207 = vmatpush1.bf16.msra.mxu0 0
    %1208 = vmatprep.subr.bf16.mxu0 0
    %1209 = vmatpush1.bf16.msra.mxu0 0
    %1210 = vmatprep.subr.bf16.mxu0 0
    %1211 = vmatpush1.bf16.msra.mxu0 0
    %1212 = vmatprep.subr.bf16.mxu0 0
    %1213 = vmatpush1.bf16.msra.mxu0 0
    %1214 = vmatprep.subr.bf16.mxu0 0
    %1215 = vmatpush1.bf16.msra.mxu0 0
    %1216 = vmatprep.mubr.bf16.mxu0 0
    %1217 = vmatmul.mubr.bf16.gmra.mrb[0].mxu0 %v1182
    %v1218 = vpop.f32.mrb[0].mxu0
    %v1219 = vadd.f32 0.0, %v1218
    %v1220 = vpop.f32.mrb[0].mxu0
    %v1221 = vpop.f32.mrb[0].mxu0
    %v1222 = vpop.f32.mrb[0].mxu0
    %1223 = vdwg.mxu0
    %v1224 = vadd.f32 %v1161, %v1219
    %v1225 = vld [vmem:[%s11] sm:$0x1]
    %v1226 = vlaneseq
    %v1227 = vshrl.u32 %v1226, 7
    %v1228 = vsub.s32 0, %v1227
    %v1229 = vrot.slane %v1225, %v1228
    %v1230 = vadd.f32 %v1224, %v1229
    %vm1231 = vcmp.gt.f32.partialorder %v1230, 0.0
    %v1232 = vmul.f32 %v1230, 0.01
    %v1233 = vsel %vm1231, %v1230, %v1232
    %v1234 = vpack.c.bf16 %v1233, %v1233
    %v1235 = vld [vmem:[#allocation12] sm:$0xf]
    %v1236 = vld [vmem:[#allocation12 + $0x4] sm:$0xf]
    %v1237 = vld [vmem:[#allocation12 + $0x8] sm:$0xf]
    %v1238 = vld [vmem:[#allocation12 + $0xc] sm:$0xf]
    %v1239 = vld [vmem:[%s11 + $0x1] sm:$0x1]
    %v1240 = vlaneseq
    %v1241 = vshrl.u32 %v1240, 7
    %v1242 = vsub.s32 0, %v1241
    %v1243 = vrot.slane %v1239, %v1242
    %v1248 = vunpack.c.l.b16 %v1235
    %v1249 = vunpack.c.l.b16 %v1236
    %v1250 = vunpack.c.l.b16 %v1237
    %v1251 = vunpack.c.l.b16 %v1238
    %v1252 = vpack.c.b16 %v1249, %v1248
    %v1253 = vpack.c.b16 %v1251, %v1250
    %v1257 = vsel %vm342, %v1234, 0
    %1259 = vmatprep.subr.bf16.mxu0 0
    %1260 = vmatpush1.bf16.msra.mxu0 %v1252
    %1261 = vmatprep.subr.bf16.mxu0 0
    %1262 = vmatpush1.bf16.msra.mxu0 %v1253
    %1263 = vmatprep.subr.bf16.mxu0 0
    %1264 = vmatpush1.bf16.msra.mxu0 0
    %1265 = vmatprep.subr.bf16.mxu0 0
    %1266 = vmatpush1.bf16.msra.mxu0 0
    %1267 = vmatprep.subr.bf16.mxu0 0
    %1268 = vmatpush1.bf16.msra.mxu0 0
    %1269 = vmatprep.subr.bf16.mxu0 0
    %1270 = vmatpush1.bf16.msra.mxu0 0
    %1271 = vmatprep.subr.bf16.mxu0 0
    %1272 = vmatpush1.bf16.msra.mxu0 0
    %1273 = vmatprep.subr.bf16.mxu0 0
    %1274 = vmatpush1.bf16.msra.mxu0 0
    %1275 = vmatprep.subr.bf16.mxu0 0
    %1276 = vmatpush1.bf16.msra.mxu0 0
    %1277 = vmatprep.subr.bf16.mxu0 0
    %1278 = vmatpush1.bf16.msra.mxu0 0
    %1279 = vmatprep.subr.bf16.mxu0 0
    %1280 = vmatpush1.bf16.msra.mxu0 0
    %1281 = vmatprep.subr.bf16.mxu0 0
    %1282 = vmatpush1.bf16.msra.mxu0 0
    %1283 = vmatprep.subr.bf16.mxu0 0
    %1284 = vmatpush1.bf16.msra.mxu0 0
    %1285 = vmatprep.subr.bf16.mxu0 0
    %1286 = vmatpush1.bf16.msra.mxu0 0
    %1287 = vmatprep.subr.bf16.mxu0 0
    %1288 = vmatpush1.bf16.msra.mxu0 0
    %1289 = vmatprep.subr.bf16.mxu0 0
    %1290 = vmatpush1.bf16.msra.mxu0 0
    %1291 = vmatprep.mubr.bf16.mxu0 0
    %1292 = vmatmul.mubr.bf16.gmra.mrb[0].mxu0 %v1257
    %v1293 = vpop.f32.mrb[0].mxu0
    %v1294 = vadd.f32 %v1243, %v1293
    %v1295 = vpop.f32.mrb[0].mxu0
    %v1296 = vpop.f32.mrb[0].mxu0
    %v1297 = vpop.f32.mrb[0].mxu0
    %1298 = vdwg.mxu0
    %vm1299 = vcmp.gt.f32.partialorder %v1294, 0.0
    %v1300 = vmul.f32 %v1294, 0.01
    %v1301 = vsel %vm1299, %v1294, %v1300
    %v1302 = vpack.c.bf16 %v1301, %v1301
    %v1303 = vld [vmem:[%s9] sm:$0xf]
    %v1304 = vld [vmem:[%s9 + $0x4] sm:$0xf]
    %v1305 = vld [vmem:[%s9 + $0x8] sm:$0xf]
    %v1306 = vld [vmem:[%s9 + $0xc] sm:$0xf]
    %v1307 = vld [vmem:[%s9 + $0x10] sm:$0xf]
    %v1308 = vld [vmem:[%s9 + $0x14] sm:$0xf]
    %v1309 = vld [vmem:[%s9 + $0x18] sm:$0xf]
    %v1310 = vld [vmem:[%s9 + $0x1c] sm:$0xf]
    %v1311 = vld [vmem:[%s11 + $0x2] sm:$0x1]
    %v1312 = vlaneseq
    %v1313 = vshrl.u32 %v1312, 7
    %v1314 = vsub.s32 0, %v1313
    %v1315 = vrot.slane %v1311, %v1314
    %v1324 = vunpack.c.l.b16 %v1303
    %v1325 = vunpack.c.l.b16 %v1304
    %v1326 = vunpack.c.l.b16 %v1305
    %v1327 = vunpack.c.l.b16 %v1306
    %v1328 = vunpack.c.l.b16 %v1307
    %v1329 = vunpack.c.l.b16 %v1308
    %v1330 = vunpack.c.l.b16 %v1309
    %v1331 = vunpack.c.l.b16 %v1310
    %v1332 = vpack.c.b16 %v1325, %v1324
    %v1333 = vpack.c.b16 %v1327, %v1326
    %v1334 = vpack.c.b16 %v1329, %v1328
    %v1335 = vpack.c.b16 %v1331, %v1330
    %v1341 = vsel %vm446, %v1302, 0
    %1343 = vmatprep.subr.bf16.mxu0 0
    %1344 = vmatpush1.bf16.msra.mxu0 %v1332
    %1345 = vmatprep.subr.bf16.mxu0 0
    %1346 = vmatpush1.bf16.msra.mxu0 %v1333
    %1347 = vmatprep.subr.bf16.mxu0 0
    %1348 = vmatpush1.bf16.msra.mxu0 %v1334
    %1349 = vmatprep.subr.bf16.mxu0 0
    %1350 = vmatpush1.bf16.msra.mxu0 %v1335
    %1351 = vmatprep.subr.bf16.mxu0 0
    %1352 = vmatpush1.bf16.msra.mxu0 0
    %1353 = vmatprep.subr.bf16.mxu0 0
    %1354 = vmatpush1.bf16.msra.mxu0 0
    %1355 = vmatprep.subr.bf16.mxu0 0
    %1356 = vmatpush1.bf16.msra.mxu0 0
    %1357 = vmatprep.subr.bf16.mxu0 0
    %1358 = vmatpush1.bf16.msra.mxu0 0
    %1359 = vmatprep.subr.bf16.mxu0 0
    %1360 = vmatpush1.bf16.msra.mxu0 0
    %1361 = vmatprep.subr.bf16.mxu0 0
    %1362 = vmatpush1.bf16.msra.mxu0 0
    %1363 = vmatprep.subr.bf16.mxu0 0
    %1364 = vmatpush1.bf16.msra.mxu0 0
    %1365 = vmatprep.subr.bf16.mxu0 0
    %1366 = vmatpush1.bf16.msra.mxu0 0
    %1367 = vmatprep.subr.bf16.mxu0 0
    %1368 = vmatpush1.bf16.msra.mxu0 0
    %1369 = vmatprep.subr.bf16.mxu0 0
    %1370 = vmatpush1.bf16.msra.mxu0 0
    %1371 = vmatprep.subr.bf16.mxu0 0
    %1372 = vmatpush1.bf16.msra.mxu0 0
    %1373 = vmatprep.subr.bf16.mxu0 0
    %1374 = vmatpush1.bf16.msra.mxu0 0
    %1375 = vmatprep.mubr.bf16.mxu0 0
    %1376 = vmatmul.mubr.bf16.gmra.mrb[0].mxu0 %v1341
    %v1377 = vpop.f32.mrb[0].mxu0
    %v1378 = vadd.f32 %v1315, %v1377
    %v1379 = vpop.f32.mrb[0].mxu0
    %v1380 = vpop.f32.mrb[0].mxu0
    %v1381 = vpop.f32.mrb[0].mxu0
    %1382 = vdwg.mxu0
    %v1383 = vmax.f32 %v1378, 0.0
    %1384 = vst [vmem:[#allocation14] sm:$0x3] %v1383
    // Predicated region
    $region74: #{tpu_custom_call.1} parent=1 // pred_check
      _
    $region75: #{tpu_custom_call.1} parent=1 // pred_check_branch
      %1386 = sbr.rel (0) target = $region77
    $region76: #{tpu_custom_call.1} parent=1 // pred_region
      %s1388 = ssub.s32 32, 32
      %1389 = vsyncadd [#allocation5], %s1388
      %s1391 = sshll.u32 [#allocation14], 4
      %s1392 = int_to_ptr.vmem [resolvable:$true] %s1391
      %1394 = dma.vmem_to_hbm [thread:$0]  %s1392, 32, %s12, [#allocation5]
    $region77: #{tpu_custom_call.1} parent=1 // pred_fallthru
      _
    // Predicated region
    $region78: #{tpu_custom_call.1} parent=1 // pred_check
      _
    $region79: #{tpu_custom_call.1} parent=1 // pred_check_branch
      %1396 = sbr.rel (0) target = $region81
    $region80: #{tpu_custom_call.1} parent=1 // pred_region
      %1397 = dma.done [#allocation5], 32
    $region81: #{tpu_custom_call.1} parent=1 // pred_fallthru
      _
    %1398 = vsyncpa [#allocation4], 1
    %1399 = vsyncpa [#allocation7], 1
    %1400 = vsyncpa [#allocation10], 1
    %1401 = vsyncpa [#allocation13], 1
    %1402 = vsyncpa [#allocation5], 1

</llo_original>
